<compile_context>
chip_gen: v5e
topology: v5e:2x2
jax: 0.10.0
libtpu: 0.0.40
codegen_flags: <defaults>
</compile_context>

<pallas_src>
import math

import jax
import jax.numpy as jnp
from jax.experimental import pallas as pl
from jax.experimental.pallas import tpu as pltpu


def _pos_embed_kernel(y_ref, x_ref, coef_ref, phase_ref, out_ref):
    # y_ref/x_ref: (1, 1, TL) f32 flattened (pre-normalized/scaled) coordinates
    # coef_ref:    (P, 1) f32  = 1 / dim_t
    # phase_ref:   (P, 1) f32  = (pi/2) * (channel % 2)   (cos(a) == sin(a+pi/2))
    # out_ref:     (1, 2P, TL), channel-major, H*W (padded) on lanes
    P = coef_ref.shape[0]
    coef = coef_ref[...]                                    # (P, 1)
    phase = phase_ref[...]                                  # (P, 1)

    # outer product (P,1)*(1,TL) -> (P,TL) on the VPU, single sin on the EUP,
    # cast only at the store (f32 accumulate regardless of out dtype).
    out_ref[0, 0:P, :] = jnp.sin(coef * y_ref[0] + phase).astype(out_ref.dtype)
    out_ref[0, P:, :] = jnp.sin(coef * x_ref[0] + phase).astype(out_ref.dtype)


def _lane_cap(two_p: int, itemsize: int) -> int:
    # Keep each (1, 2P, TL) output buffer <= ~4 MiB (8 MiB double-buffered):
    # fits every generation's default scoped-VMEM budget (v5e 16 MiB, v7x 32 MiB).
    budget = 4 * 1024 * 1024
    cap = budget // max(two_p * itemsize, 1)
    return max(128, min(4096, (cap // 128) * 128))


def _pick_lane_tile(hwp: int, cap: int) -> int:
    # hwp is a multiple of 128.  Largest 128-multiple tile dividing hwp that
    # (a) stays <= cap and (b) leaves >= 2 grid blocks whenever hwp >= 256
    # (so both v7x TensorCores get work even at batch 1).
    limit = min(cap, hwp if hwp <= 128 else hwp // 2)
    t = max(128, (limit // 128) * 128)
    while t > 128 and hwp % t != 0:
        t -= 128
    return t


def position_embedding_sine(x, mask=None, *, num_pos_feats,
                            temperature=10000, normalize=False,
                            out_dtype=jnp.float32):
    B, _, H, W = x.shape
    P = int(num_pos_feats)
    out_dtype = jnp.dtype(out_dtype)
    if P % 8 != 0:
        raise ValueError("num_pos_feats must be a multiple of 8 "
                         "(sublane-aligned channel split)")
    if out_dtype == jnp.dtype(jnp.bfloat16) and P % 16 != 0:
        raise ValueError("bf16 output requires num_pos_feats % 16 == 0")

    HW = H * W
    HWp = ((HW + 127) // 128) * 128          # pad lane dim to a 128 multiple
    scale = 2.0 * math.pi
    eps = 1e-6

    # per-channel coefficient (1/dim_t) and sin-phase (cos(a) = sin(a + pi/2))
    k = jnp.arange(P, dtype=jnp.float32)
    dim_t = temperature ** (2.0 * jnp.floor(k / 2.0) / P)
    coef = (1.0 / dim_t).reshape(P, 1).astype(jnp.float32)
    phase = ((k % 2.0) * (math.pi / 2.0)).reshape(P, 1).astype(jnp.float32)

    if mask is None:
        # fast path: cumsum of an all-ones mask is just (row+1) / (col+1);
        # identical for every batch -> compute ONCE, broadcast in the wrapper.
        row = jnp.arange(1, H + 1, dtype=jnp.float32)
        col = jnp.arange(1, W + 1, dtype=jnp.float32)
        if normalize:
            row = row / (H + eps) * scale
            col = col / (W + eps) * scale
        y_flat = jnp.broadcast_to(row[:, None], (H, W)).reshape(1, 1, HW)
        x_flat = jnp.broadcast_to(col[None, :], (H, W)).reshape(1, 1, HW)
        n_batch = 1
    else:
        # general path: exact cumsum + normalization on the tiny (B,H,W) mask
        # in the wrapper (O(B*H*W), f32) vs the kernel's O(B*2P*H*W) expansion.
        not_mask = jnp.logical_not(mask).astype(jnp.float32)      # (B, H, W)
        y_embed = jnp.cumsum(not_mask, axis=1)
        x_embed = jnp.cumsum(not_mask, axis=2)
        if normalize:
            y_embed = y_embed / (y_embed[:, -1:, :] + eps) * scale
            x_embed = x_embed / (x_embed[:, :, -1:] + eps) * scale
        y_flat = y_embed.reshape(B, 1, HW)
        x_flat = x_embed.reshape(B, 1, HW)
        n_batch = B

    if HWp != HW:
        pad = ((0, 0), (0, 0), (0, HWp - HW))
        y_flat = jnp.pad(y_flat, pad)
        x_flat = jnp.pad(x_flat, pad)

    TL = _pick_lane_tile(HWp, _lane_cap(2 * P, out_dtype.itemsize))
    n_lane = HWp // TL

    if n_batch == 1:
        grid = (n_lane,)
        vec_idx = lambda l: (0, 0, l)
        cp_idx = lambda l: (0, 0)
        out_idx = lambda l: (0, 0, l)
        semantics = ("parallel",)
    else:
        grid = (n_batch, n_lane)
        vec_idx = lambda b, l: (b, 0, l)
        cp_idx = lambda b, l: (0, 0)
        out_idx = lambda b, l: (b, 0, l)
        semantics = ("parallel", "parallel")

    elems = n_batch * 2 * P * HWp
    cost = pl.CostEstimate(
        flops=int(2 * elems),
        transcendentals=int(elems),
        bytes_accessed=int(elems * out_dtype.itemsize
                           + n_batch * 2 * HWp * 4 + 2 * (P * 4)))

    out = pl.pallas_call(
        _pos_embed_kernel,
        out_shape=jax.ShapeDtypeStruct((n_batch, 2 * P, HWp), out_dtype),
        grid_spec=pltpu.PrefetchScalarGridSpec(
            num_scalar_prefetch=0,
            grid=grid,
            in_specs=[
                pl.BlockSpec((1, 1, TL), vec_idx),
                pl.BlockSpec((1, 1, TL), vec_idx),
                pl.BlockSpec((P, 1), cp_idx),
                pl.BlockSpec((P, 1), cp_idx),
            ],
            out_specs=pl.BlockSpec((1, 2 * P, TL), out_idx),
        ),
        compiler_params=pltpu.CompilerParams(dimension_semantics=semantics),
        cost_estimate=cost,
    )(y_flat, x_flat, coef, phase)

    if HWp != HW:
        out = out[:, :, :HW]
    out = out.reshape(n_batch, 2 * P, H, W)     # free trailing-dim split
    if n_batch != B:
        out = jnp.broadcast_to(out, (B, 2 * P, H, W))
    return out


def _reference(x, mask, num_pos_feats, temperature=10000, normalize=False):
    # pure-JAX port of the PyTorch forward, for validation
    B, _, H, W = x.shape
    if mask is None:
        mask = jnp.zeros((B, H, W), dtype=jnp.bool_)
    not_mask = jnp.logical_not(mask)
    y_embed = jnp.cumsum(not_mask.astype(jnp.float32), axis=1)
    x_embed = jnp.cumsum(not_mask.astype(jnp.float32), axis=2)
    scale = 2 * math.pi
    if normalize:
        eps = 1e-6
        y_embed = y_embed / (y_embed[:, -1:, :] + eps) * scale
        x_embed = x_embed / (x_embed[:, :, -1:] + eps) * scale
    dim_t = jnp.arange(num_pos_feats, dtype=jnp.float32)
    dim_t = temperature ** (2 * jnp.floor(dim_t / 2) / num_pos_feats)
    pos_x = x_embed[:, :, :, None] / dim_t
    pos_y = y_embed[:, :, :, None] / dim_t
    pos_x = jnp.stack((jnp.sin(pos_x[:, :, :, 0::2]),
                       jnp.cos(pos_x[:, :, :, 1::2])), axis=4).reshape(B, H, W, -1)
    pos_y = jnp.stack((jnp.sin(pos_y[:, :, :, 0::2]),
                       jnp.cos(pos_y[:, :, :, 1::2])), axis=4).reshape(B, H, W, -1)
    pos = jnp.concatenate((pos_y, pos_x), axis=3).transpose(0, 3, 1, 2)
    return pos


if __name__ == "__main__":
    key = jax.random.PRNGKey(0)
    B, C, H, W = 2, 4, 16, 16
    num_pos_feats = 32          # output channels = 2 * 32 = 64

    x = jax.random.normal(key, (B, C, H, W), dtype=jnp.float32)

    # 1) mask=None, no normalization (single-copy kernel + wrapper broadcast)
    out = position_embedding_sine(x, mask=None, num_pos_feats=num_pos_feats,
                                  temperature=10000, normalize=False)
    out = jax.block_until_ready(out)
    ref = _reference(x, None, num_pos_feats, temperature=10000, normalize=False)
    assert out.shape == (B, 2 * num_pos_feats, H, W), out.shape
    assert jnp.allclose(out, ref, atol=1e-4, rtol=1e-4), "mismatch (mask=None)"

    # 2) mask=None, normalized
    out_n = position_embedding_sine(x, mask=None, num_pos_feats=num_pos_feats,
                                    temperature=10000, normalize=True)
    out_n = jax.block_until_ready(out_n)
    ref_n = _reference(x, None, num_pos_feats, temperature=10000, normalize=True)
    assert jnp.allclose(out_n, ref_n, atol=1e-4, rtol=1e-4), "mismatch (normalize)"

    # 3) padding mask (DETR-style), normalized
    mask = jnp.zeros((B, H, W), dtype=jnp.bool_)
    mask = mask.at[0, 12:, :].set(True).at[0, :, 14:].set(True)
    mask = mask.at[1, :, 10:].set(True)
    out_m = position_embedding_sine(x, mask=mask, num_pos_feats=num_pos_feats,
                                    temperature=10000, normalize=True)
    out_m = jax.block_until_ready(out_m)
    ref_m = _reference(x, mask, num_pos_feats, temperature=10000, normalize=True)
    assert jnp.allclose(out_m, ref_m, atol=1e-4, rtol=1e-4), "mismatch (mask path)"

    # 4) non-128-aligned H*W (exercises the lane-padding path), with mask
    Hs, Ws = 10, 12
    xs = jax.random.normal(jax.random.PRNGKey(1), (B, C, Hs, Ws), dtype=jnp.float32)
    mask_s = jnp.zeros((B, Hs, Ws), dtype=jnp.bool_).at[0, 7:, :].set(True)
    out_s = position_embedding_sine(xs, mask=mask_s, num_pos_feats=num_pos_feats,
                                    temperature=10000, normalize=True)
    out_s = jax.block_until_ready(out_s)
    ref_s = _reference(xs, mask_s, num_pos_feats, temperature=10000, normalize=True)
    assert out_s.shape == (B, 2 * num_pos_feats, Hs, Ws), out_s.shape
    assert jnp.allclose(out_s, ref_s, atol=1e-4, rtol=1e-4), "mismatch (padded HW)"

    # 5) bf16 output mode (explicit opt-in; loose tolerance, f32 math in-kernel)
    out_bf = position_embedding_sine(x, mask=None, num_pos_feats=num_pos_feats,
                                     temperature=10000, normalize=True,
                                     out_dtype=jnp.bfloat16)
    out_bf = jax.block_until_ready(out_bf)
    assert out_bf.dtype == jnp.bfloat16
    assert jnp.allclose(out_bf.astype(jnp.float32), ref_n, atol=2e-2), "mismatch (bf16)"

    print("KERNEL_OK")
</pallas_src>

<mosaic_0001>
module attributes {stable_mosaic.version = 11 : i64} {
  func.func @_pos_embed_kernel(%arg0: i32, %arg1: memref<1x1x128xf32, #tpu.memory_space<vmem>>, %arg2: memref<1x1x128xf32, #tpu.memory_space<vmem>>, %arg3: memref<32x1xf32, #tpu.memory_space<vmem>>, %arg4: memref<32x1xf32, #tpu.memory_space<vmem>>, %arg5: memref<1x64x128xf32, #tpu.memory_space<vmem>>) attributes {dimension_semantics = [#tpu.dimension_semantics<parallel>], iteration_bounds = array<i64: 2>, scalar_prefetch = 0 : i64, scratch_operands = 0 : i64, tpu.core_type = #tpu.core_type<tc>, window_params = [{transform_indices = @transform_0, window_bounds = array<i64: 1, 1, 128>}, {transform_indices = @transform_1, window_bounds = array<i64: 1, 1, 128>}, {pipeline_mode = #tpu.pipeline_mode<synchronous>, transform_indices = @transform_2, window_bounds = array<i64: 32, 1>}, {pipeline_mode = #tpu.pipeline_mode<synchronous>, transform_indices = @transform_3, window_bounds = array<i64: 32, 1>}, {transform_indices = @transform_4, window_bounds = array<i64: 1, 64, 128>}]} {
    %c0 = arith.constant 0 : index
    %c0_0 = arith.constant 0 : index
    %0 = vector.load %arg3[%c0, %c0_0] : memref<32x1xf32, #tpu.memory_space<vmem>>, vector<32x1xf32>
    %c0_1 = arith.constant 0 : index
    %c0_2 = arith.constant 0 : index
    %1 = vector.load %arg4[%c0_1, %c0_2] : memref<32x1xf32, #tpu.memory_space<vmem>>, vector<32x1xf32>
    %c0_3 = arith.constant 0 : index
    %c0_4 = arith.constant 0 : index
    %c0_5 = arith.constant 0 : index
    %2 = vector.load %arg1[%c0_3, %c0_4, %c0_5] : memref<1x1x128xf32, #tpu.memory_space<vmem>>, vector<1x1x128xf32>
    %3 = vector.shape_cast %2 : vector<1x1x128xf32> to vector<1x128xf32>
    %4 = vector.broadcast %0 : vector<32x1xf32> to vector<32x128xf32>
    %5 = vector.broadcast %3 : vector<1x128xf32> to vector<32x128xf32>
    %6 = arith.mulf %4, %5 : vector<32x128xf32>
    %7 = vector.broadcast %1 : vector<32x1xf32> to vector<32x128xf32>
    %8 = arith.addf %6, %7 : vector<32x128xf32>
    %9 = math.sin %8 : vector<32x128xf32>
    %c0_6 = arith.constant 0 : index
    %c0_7 = arith.constant 0 : index
    %c0_8 = arith.constant 0 : index
    %10 = vector.load %arg5[%c0_6, %c0_7, %c0_8] : memref<1x64x128xf32, #tpu.memory_space<vmem>>, vector<1x32x128xf32>
    %11 = vector.shape_cast %10 : vector<1x32x128xf32> to vector<32x128xf32>
    %12 = vector.shape_cast %9 : vector<32x128xf32> to vector<1x32x128xf32>
    tpu.vector_store %arg5[%c0_6, %c0_7, %c0_8], %12 {strides = array<i32>} : memref<1x64x128xf32, #tpu.memory_space<vmem>>, vector<1x32x128xf32>,
    %c0_9 = arith.constant 0 : index
    %c0_10 = arith.constant 0 : index
    %c0_11 = arith.constant 0 : index
    %13 = vector.load %arg2[%c0_9, %c0_10, %c0_11] : memref<1x1x128xf32, #tpu.memory_space<vmem>>, vector<1x1x128xf32>
    %14 = vector.shape_cast %13 : vector<1x1x128xf32> to vector<1x128xf32>
    %15 = vector.broadcast %0 : vector<32x1xf32> to vector<32x128xf32>
    %16 = vector.broadcast %14 : vector<1x128xf32> to vector<32x128xf32>
    %17 = arith.mulf %15, %16 : vector<32x128xf32>
    %18 = vector.broadcast %1 : vector<32x1xf32> to vector<32x128xf32>
    %19 = arith.addf %17, %18 : vector<32x128xf32>
    %20 = math.sin %19 : vector<32x128xf32>
    %c0_12 = arith.constant 0 : index
    %c32 = arith.constant 32 : index
    %c0_13 = arith.constant 0 : index
    %21 = vector.load %arg5[%c0_12, %c32, %c0_13] : memref<1x64x128xf32, #tpu.memory_space<vmem>>, vector<1x32x128xf32>
    %22 = vector.shape_cast %21 : vector<1x32x128xf32> to vector<32x128xf32>
    %23 = vector.shape_cast %20 : vector<32x128xf32> to vector<1x32x128xf32>
    tpu.vector_store %arg5[%c0_12, %c32, %c0_13], %23 {strides = array<i32>} : memref<1x64x128xf32, #tpu.memory_space<vmem>>, vector<1x32x128xf32>,
    return
  }
  func.func @transform_0(%arg0: i32) -> (i32, i32, i32) {
    %c0_i32 = arith.constant 0 : i32
    %c0_i32_0 = arith.constant 0 : i32
    %c0_i32_1 = arith.constant 0 : i32
    return %c0_i32, %c0_i32_0, %arg0 : i32, i32, i32
  }
  func.func @transform_1(%arg0: i32) -> (i32, i32, i32) {
    %c0_i32 = arith.constant 0 : i32
    %c0_i32_0 = arith.constant 0 : i32
    %c0_i32_1 = arith.constant 0 : i32
    return %c0_i32, %c0_i32_0, %arg0 : i32, i32, i32
  }
  func.func @transform_2(%arg0: i32) -> (i32, i32) {
    %c0_i32 = arith.constant 0 : i32
    %c0_i32_0 = arith.constant 0 : i32
    %c0_i32_1 = arith.constant 0 : i32
    return %c0_i32, %c0_i32_0 : i32, i32
  }
  func.func @transform_3(%arg0: i32) -> (i32, i32) {
    %c0_i32 = arith.constant 0 : i32
    %c0_i32_0 = arith.constant 0 : i32
    %c0_i32_1 = arith.constant 0 : i32
    return %c0_i32, %c0_i32_0 : i32, i32
  }
  func.func @transform_4(%arg0: i32) -> (i32, i32, i32) {
    %c0_i32 = arith.constant 0 : i32
    %c0_i32_0 = arith.constant 0 : i32
    %c0_i32_1 = arith.constant 0 : i32
    return %c0_i32, %c0_i32_0, %arg0 : i32, i32, i32
  }
}

</mosaic_0001>

<llo_original>
// kernel: tpu_custom_call.1
$region0: #{tpu_custom_call.1}
  #allocation0 [shape = 'u32[]', space=smem, size = 0x4, offset = 0x4, fixed_abs, tag = 'smem constant byte address 0x4 - core index']
  #allocation1 [shape = 'u32[72,128]{1,0:T(1,128)}', space=vmem, size = 0x9000, scoped, tag = 'internal scratch']
  %s0 = inlined_call_operand.vmem [shape: f32[1,1,256], index: 0, kind: input, shape index: {}]
  %s1 = inlined_call_operand.vmem [shape: f32[1,1,256], index: 1, kind: input, shape index: {}]
  %s2 = inlined_call_operand.vmem [shape: f32[32,1], index: 2, kind: input, shape index: {}]
  %s3 = inlined_call_operand.vmem [shape: f32[32,1], index: 3, kind: input, shape index: {}]
  %s4 = inlined_call_operand.hbm [shape: f32[1,64,256], index: 4, kind: output, shape index: {}]
  %s5 = sld [smem:[#allocation0]]
  $region49: #{tpu_custom_call.1} parent=0
    _
  %s7 = ssub.s32 1, %s5
  %s8 = scalar_select 0, %s7, %s5
  $region1: #{tpu_custom_call.1} parent=0
    #allocation2 [shape = 'u8[65536]{0}', space=vmem, size = 0x10000, scoped, tag = 'output window, operand 0']
    #allocation3 [shape = 's32[2]{0}', space=sflag, size = 0x8, scoped, tag = 'scoped memory for tpu_custom_call.1']
    %9 = vsyncpa [#allocation3], 0
    %s10 = scalar_lea.sflag [#allocation3], 1
    %11 = vsyncpa %s10, 0
    loop: start=0, step=1, limit=4
    $region2: #{tpu_custom_call.1} parent=1 // loop_pre_header
      _
    $region3: #{tpu_custom_call.1} parent=1 // loop_header
      %s13 = sphi 0, %s17
      %p14 = scmp.ge.s32.totalorder %s13, 4
      %s23 = sphi 0, %s25
      %s26 = sphi 0, %s23
      %s27 = sphi 0, %s26
      %s43 = sphi 0, %s27
      %s49 = sphi 0, %s51
      %s52 = sphi 0, %s49
      %s53 = sphi 0, %s52
      %s69 = sphi 0, %s53
      %s73 = sphi 0, %s73
      %s75 = sphi 0, %s73
      %s76 = sphi 0, %s75
      %s90 = sphi 0, %s76
      %s94 = sphi 0, %s94
      %s96 = sphi 0, %s94
      %s97 = sphi 0, %s96
      %s111 = sphi 0, %s97
      %s117 = sphi 0, %s119
      %s120 = sphi 0, %s117
      %s121 = sphi 0, %s120
      %s137 = sphi 0, %s121
    $region4: #{tpu_custom_call.1} parent=1 // loop_header_branch
      %16 = sbr.rel (%p14) target = $region8
    $region5: #{tpu_custom_call.1} parent=1 // loop_body
      %s18 = ssub.s32 %s13, 1
      %s19 = ssub.s32 %s13, 2
      %s20 = sadd.s32 %s13, 1
      %s21 = ssub.s32 %s13, %s20
      %p22 = scmp.eq.s32.totalorder %s21, 0
      %s24 = sadd.s32 %s23, 1
      %s25 = scalar_select %p22, %s23, %s24
      %p28 = pneg %p22
      %p29 = scmp.eq.s32.totalorder %s13, 1
      %p30 = por %p28, %p29
      %p31 = scmp.ne.s32.totalorder %s23, %s26
      %p32 = scmp.eq.s32.totalorder %s13, 0
      %p33 = por %p31, %p32
      %p34 = scmp.ne.s32.totalorder %s23, %s26
      %p35 = scmp.eq.s32.totalorder %s18, 1
      %p36 = por %p34, %p35
      %p37 = scmp.ne.s32.totalorder %s26, %s27
      %p38 = scmp.eq.s32.totalorder %s18, 0
      %p39 = por %p37, %p38
      %p40 = scmp.ne.s32.totalorder %s26, %s27
      %p41 = scmp.eq.s32.totalorder %s19, 1
      %p42 = por %p40, %p41
      %p44 = scmp.ne.s32.totalorder %s27, %s43
      %p45 = scmp.eq.s32.totalorder %s19, 0
      %p46 = por %p44, %p45
      %s47 = ssub.s32 %s13, %s20
      %p48 = scmp.eq.s32.totalorder %s47, 0
      %s50 = sadd.s32 %s49, 1
      %s51 = scalar_select %p48, %s49, %s50
      %p54 = pneg %p48
      %p55 = scmp.eq.s32.totalorder %s13, 1
      %p56 = por %p54, %p55
      %p57 = scmp.ne.s32.totalorder %s49, %s52
      %p58 = scmp.eq.s32.totalorder %s13, 0
      %p59 = por %p57, %p58
      %p60 = scmp.ne.s32.totalorder %s49, %s52
      %p61 = scmp.eq.s32.totalorder %s18, 1
      %p62 = por %p60, %p61
      %p63 = scmp.ne.s32.totalorder %s52, %s53
      %p64 = scmp.eq.s32.totalorder %s18, 0
      %p65 = por %p63, %p64
      %p66 = scmp.ne.s32.totalorder %s52, %s53
      %p67 = scmp.eq.s32.totalorder %s19, 1
      %p68 = por %p66, %p67
      %p70 = scmp.ne.s32.totalorder %s53, %s69
      %p71 = scmp.eq.s32.totalorder %s19, 0
      %p72 = por %p70, %p71
      %s74 = sadd.s32 %s73, 1
      %p77 = scmp.eq.s32.totalorder %s13, 1
      %p78 = scmp.ne.s32.totalorder %s73, %s75
      %p79 = scmp.eq.s32.totalorder %s13, 0
      %p80 = por %p78, %p79
      %p81 = scmp.ne.s32.totalorder %s73, %s75
      %p82 = scmp.eq.s32.totalorder %s18, 1
      %p83 = por %p81, %p82
      %p84 = scmp.ne.s32.totalorder %s75, %s76
      %p85 = scmp.eq.s32.totalorder %s18, 0
      %p86 = por %p84, %p85
      %p87 = scmp.ne.s32.totalorder %s75, %s76
      %p88 = scmp.eq.s32.totalorder %s19, 1
      %p89 = por %p87, %p88
      %p91 = scmp.ne.s32.totalorder %s76, %s90
      %p92 = scmp.eq.s32.totalorder %s19, 0
      %p93 = por %p91, %p92
      %s95 = sadd.s32 %s94, 1
      %p98 = scmp.eq.s32.totalorder %s13, 1
      %p99 = scmp.ne.s32.totalorder %s94, %s96
      %p100 = scmp.eq.s32.totalorder %s13, 0
      %p101 = por %p99, %p100
      %p102 = scmp.ne.s32.totalorder %s94, %s96
      %p103 = scmp.eq.s32.totalorder %s18, 1
      %p104 = por %p102, %p103
      %p105 = scmp.ne.s32.totalorder %s96, %s97
      %p106 = scmp.eq.s32.totalorder %s18, 0
      %p107 = por %p105, %p106
      %p108 = scmp.ne.s32.totalorder %s96, %s97
      %p109 = scmp.eq.s32.totalorder %s19, 1
      %p110 = por %p108, %p109
      %p112 = scmp.ne.s32.totalorder %s97, %s111
      %p113 = scmp.eq.s32.totalorder %s19, 0
      %p114 = por %p112, %p113
      %s115 = ssub.s32 %s13, %s20
      %p116 = scmp.eq.s32.totalorder %s115, 0
      %s118 = sadd.s32 %s117, 1
      %s119 = scalar_select %p116, %s117, %s118
      %p122 = pneg %p116
      %p123 = scmp.eq.s32.totalorder %s13, 1
      %p124 = por %p122, %p123
      %p125 = scmp.ne.s32.totalorder %s117, %s120
      %p126 = scmp.eq.s32.totalorder %s13, 0
      %p127 = por %p125, %p126
      %p128 = scmp.ne.s32.totalorder %s117, %s120
      %p129 = scmp.eq.s32.totalorder %s18, 1
      %p130 = por %p128, %p129
      %p131 = scmp.ne.s32.totalorder %s120, %s121
      %p132 = scmp.eq.s32.totalorder %s18, 0
      %p133 = por %p131, %p132
      %p134 = scmp.ne.s32.totalorder %s120, %s121
      %p135 = scmp.eq.s32.totalorder %s19, 1
      %p136 = por %p134, %p135
      %p138 = scmp.ne.s32.totalorder %s121, %s137
      %p139 = scmp.eq.s32.totalorder %s19, 0
      %p140 = por %p138, %p139
      %p141 = scmp.le.s32.totalorder 1, %s13
      %p142 = scmp.lt.s32.totalorder %s13, 3
      %p143 = pnand %p141, %p142
      %p144 = pneg %p143
      // Predicated region
      $region9: #{tpu_custom_call.1} parent=5 // pred_check
        _
      $region10: #{tpu_custom_call.1} parent=5 // pred_check_branch
        %146 = sbr.rel (%p143) target = $region12
      $region11: #{tpu_custom_call.1} parent=5 // pred_region
        %s147 = ssub.s32 %s13, 1
        // Predicated region
        $region13: #{tpu_custom_call.1} parent=11 // pred_check
          %p148 = pneg %p86
        $region14: #{tpu_custom_call.1} parent=11 // pred_check_branch
          %150 = sbr.rel (%p148) target = $region16
        $region15: #{tpu_custom_call.1} parent=11 // pred_region
          _
        $region16: #{tpu_custom_call.1} parent=11 // pred_fallthru
          _
        // Predicated region
        $region17: #{tpu_custom_call.1} parent=11 // pred_check
          %p151 = pneg %p107
        $region18: #{tpu_custom_call.1} parent=11 // pred_check_branch
          %153 = sbr.rel (%p151) target = $region20
        $region19: #{tpu_custom_call.1} parent=11 // pred_region
          _
        $region20: #{tpu_custom_call.1} parent=11 // pred_fallthru
          _
      $region12: #{tpu_custom_call.1} parent=5 // pred_fallthru
        _
      %p154 = scmp.lt.s32.totalorder %s13, 2
      // Predicated region
      $region21: #{tpu_custom_call.1} parent=5 // pred_check
        %p155 = pneg %p154
      $region22: #{tpu_custom_call.1} parent=5 // pred_check_branch
        %157 = sbr.rel (%p155) target = $region24
      $region23: #{tpu_custom_call.1} parent=5 // pred_region
        // Predicated region
        $region25: #{tpu_custom_call.1} parent=23 // pred_check
          %p158 = pneg %p33
        $region26: #{tpu_custom_call.1} parent=23 // pred_check_branch
          %160 = sbr.rel (%p158) target = $region28
        $region27: #{tpu_custom_call.1} parent=23 // pred_region
          %p161 = scmp.lt.s32.totalorder %s13, 1
          %s162 = scalar_select %p161, %s13, 1
          %s163 = scalar_lea.vmem %s0, %s162
        $region28: #{tpu_custom_call.1} parent=23 // pred_fallthru
          _
        // Predicated region
        $region29: #{tpu_custom_call.1} parent=23 // pred_check
          %p164 = pneg %p59
        $region30: #{tpu_custom_call.1} parent=23 // pred_check_branch
          %166 = sbr.rel (%p164) target = $region32
        $region31: #{tpu_custom_call.1} parent=23 // pred_region
          %p167 = scmp.lt.s32.totalorder %s13, 1
          %s168 = scalar_select %p167, %s13, 1
          %s169 = scalar_lea.vmem %s1, %s168
        $region32: #{tpu_custom_call.1} parent=23 // pred_fallthru
          _
      $region24: #{tpu_custom_call.1} parent=5 // pred_fallthru
        _
      %p170 = scmp.le.s32.totalorder 1, %s13
      %p171 = scmp.lt.s32.totalorder %s13, 3
      %p172 = pnand %p170, %p171
      %p173 = pneg %p172
      // Predicated region
      $region33: #{tpu_custom_call.1} parent=5 // pred_check
        _
      $region34: #{tpu_custom_call.1} parent=5 // pred_check_branch
        %175 = sbr.rel (%p172) target = $region36
      $region35: #{tpu_custom_call.1} parent=5 // pred_region
        %s176 = ssub.s32 %s13, 1
        %p177 = scmp.lt.s32.totalorder %s18, 1
        %s178 = scalar_select %p177, %s18, 1
        %s179 = scalar_lea.vmem %s0, %s178
        %p180 = pneg %p39
        %p181 = pneg %p36
        %p182 = scmp.lt.s32.totalorder %s18, 1
        %s183 = scalar_select %p182, %s18, 1
        %s184 = scalar_lea.vmem %s1, %s183
        %p185 = pneg %p65
        %p186 = pneg %p62
        %p187 = pneg %p86
        %p188 = pneg %p83
        %p189 = pneg %p107
        %p190 = pneg %p104
        %p191 = pneg %p133
        %p192 = pneg %p130
        %s193 = sand.u32 %s120, 1
        %s194 = scalar_lea.sflag [#allocation3], %s193
        %s195 = sand.u32 %s120, 1
        %s196 = smul.addr %s195, 64
        %s197 = scalar_lea.vmem [#allocation2], %s196
        %p198 = scmp.lt.s32.totalorder %s18, 1
        %s199 = scalar_select %p198, %s18, 1
        %s200 = scalar_lea.vmem %s0, %s199
        %p201 = scmp.lt.s32.totalorder %s18, 1
        %s202 = scalar_select %p201, %s18, 1
        %s203 = scalar_lea.vmem %s1, %s202
        %v204 = vld [vmem:[%s2] sm:$0xff]
        %v205 = vld [vmem:[%s2 + $0x8] sm:$0xff]
        %v206 = vld [vmem:[%s2 + $0x10] sm:$0xff]
        %v207 = vld [vmem:[%s2 + $0x18] sm:$0xff]
        %v208 = vld [vmem:[%s3] sm:$0xff]
        %v209 = vld [vmem:[%s3 + $0x8] sm:$0xff]
        %v210 = vld [vmem:[%s3 + $0x10] sm:$0xff]
        %v211 = vld [vmem:[%s3 + $0x18] sm:$0xff]
        %v212 = vld [vmem:[%s200] sm:$0x1]
        %214 = vset.pattern.permute.xlu0 0
        %215 = vperm.xlu0 %214, %v204
        %v216 = vpop.permute.xlu0 %215
        %219 = vset.pattern.permute.xlu0 0
        %220 = vperm.xlu0 %219, %v205
        %v221 = vpop.permute.xlu0 %220
        %224 = vset.pattern.permute.xlu0 0
        %225 = vperm.xlu0 %224, %v206
        %v226 = vpop.permute.xlu0 %225
        %229 = vset.pattern.permute.xlu0 0
        %230 = vperm.xlu0 %229, %v207
        %v231 = vpop.permute.xlu0 %230
        %v234 = vperm.slane %v212, 0
        %v236 = vmul.f32 %v216, %v234
        %v237 = vmul.f32 %v221, %v234
        %v238 = vmul.f32 %v226, %v234
        %v239 = vmul.f32 %v231, %v234
        %241 = vset.pattern.permute.xlu0 0
        %242 = vperm.xlu0 %241, %v208
        %v243 = vpop.permute.xlu0 %242
        %246 = vset.pattern.permute.xlu0 0
        %247 = vperm.xlu0 %246, %v209
        %v248 = vpop.permute.xlu0 %247
        %251 = vset.pattern.permute.xlu0 0
        %252 = vperm.xlu0 %251, %v210
        %v253 = vpop.permute.xlu0 %252
        %256 = vset.pattern.permute.xlu0 0
        %257 = vperm.xlu0 %256, %v211
        %v258 = vpop.permute.xlu0 %257
        %v260 = vadd.f32 %v236, %v243
        %v261 = vadd.f32 %v237, %v248
        %v262 = vadd.f32 %v238, %v253
        %v263 = vadd.f32 %v239, %v258
        %v264 = vand.u32 2147483647, %v260
        %vm265 = vcmp.le.f32.partialorder %v264, 0.7853982
        %vm266 = vcmp.lt.s32.totalorder %v260, 0
        %v267 = vand.u32 %v260, 2139095040
        %v268 = vshrl.u32 %v267, 23
        %v269 = vsub.s32 %v268, 127
        %v270 = vand.u32 2147483647, %v260
        %v271 = vand.u32 %v270, 8388607
        %v272 = vor.u32 %v271, 8388608
        %v273 = vsub.s32 0, %v272
        %v274 = vadd.s32 %v269, 1
        %vm275 = vcmp.gt.s32.totalorder %v274, 0
        %v276 = vsel %vm275, %v274, 0
        %v277 = vshrl.u32 %v276, 5
        %v278 = vand.u32 %v276, 31
        %v279 = vsub.s32 32, %v278
        %v280 = vshrl.u32 683565275, %v279
        %v281 = vshll.u32 683565275, %v278
        %v282 = vshrl.u32 2475754826, %v279
        %v283 = vor.u32 %v281, %v282
        %v284 = vshll.u32 2475754826, %v278
        %v285 = vshrl.u32 2131351028, %v279
        %v286 = vor.u32 %v284, %v285
        %v287 = vshll.u32 2131351028, %v278
        %v288 = vshrl.u32 2102212464, %v279
        %v289 = vor.u32 %v287, %v288
        %v290 = vshll.u32 2102212464, %v278
        %v291 = vshrl.u32 920167782, %v279
        %v292 = vor.u32 %v290, %v291
        %v293 = vshll.u32 920167782, %v278
        %v294 = vshrl.u32 1326507024, %v279
        %v295 = vor.u32 %v293, %v294
        %vm296 = vcmp.lt.s32.totalorder %v277, 1
        %vm297 = vcmp.lt.s32.totalorder %v277, 2
        %vm298 = vcmp.lt.s32.totalorder %v277, 3
        %vm299 = vcmp.lt.s32.totalorder %v277, 4
        %v300 = vsel %vm296, %v280, %v283
        %v301 = vsel %vm299, %v289, 2102212464
        %v302 = vsel %vm298, %v286, %v301
        %v303 = vsel %vm297, %v300, %v302
        %v304 = vsel %vm296, %v283, %v286
        %v305 = vsel %vm299, %v292, 920167782
        %v306 = vsel %vm298, %v289, %v305
        %v307 = vsel %vm297, %v304, %v306
        %v308 = vsel %vm296, %v286, %v289
        %v309 = vsel %vm299, %v295, 1326507024
        %v310 = vsel %vm298, %v292, %v309
        %v311 = vsel %vm297, %v308, %v310
        %v312 = vshll.u32 %v272, 8
        %v313 = vand.u32 %v312, 65535
        %v314 = vshrl.u32 %v312, 16
        %v315 = vand.u32 %v311, 65535
        %v316 = vshrl.u32 %v311, 16
        %v317 = vmul.u32 %v313, %v315
        %v318 = vmul.u32 %v313, %v316
        %v319 = vmul.u32 %v314, %v315
        %v320 = vmul.u32 %v314, %v316
        %v321 = vshll.u32 %v318, 16
        %v322 = vshrl.u32 %v318, 16
        %v323 = vshll.u32 %v319, 16
        %v324 = vshrl.u32 %v319, 16
        %vm325 = vc.u32 %v317, %v321
        %v326 = vsel %vm325, 1, 0
        %v327 = vadd.s32 %v317, %v321
        %v328 = vadd.s32 %v320, %v326
        %vm329 = vc.u32 %v327, %v323
        %v330 = vsel %vm329, 1, 0
        %v331 = vadd.s32 %v327, %v323
        %v332 = vadd.s32 %v328, %v330
        %v333 = vadd.s32 %v332, %v322
        %v334 = vadd.s32 %v333, %v324
        %v335 = vand.u32 %v312, 65535
        %v336 = vshrl.u32 %v312, 16
        %v337 = vand.u32 %v307, 65535
        %v338 = vshrl.u32 %v307, 16
        %v339 = vmul.u32 %v335, %v337
        %v340 = vmul.u32 %v335, %v338
        %v341 = vmul.u32 %v336, %v337
        %v342 = vmul.u32 %v336, %v338
        %v343 = vshll.u32 %v340, 16
        %v344 = vshrl.u32 %v340, 16
        %v345 = vshll.u32 %v341, 16
        %v346 = vshrl.u32 %v341, 16
        %vm347 = vc.u32 %v339, %v343
        %v348 = vsel %vm347, 1, 0
        %v349 = vadd.s32 %v339, %v343
        %v350 = vadd.s32 %v342, %v348
        %vm351 = vc.u32 %v349, %v345
        %v352 = vsel %vm351, 1, 0
        %v353 = vadd.s32 %v349, %v345
        %v354 = vadd.s32 %v350, %v352
        %v355 = vadd.s32 %v354, %v344
        %v356 = vadd.s32 %v355, %v346
        %v357 = vmul.u32 %v312, %v303
        %v358 = vadd.s32 %v334, %v353
        %vm359 = vc.u32 %v334, %v353
        %v360 = vadd.s32 %v356, 1
        %v361 = vsel %vm359, %v360, %v356
        %v362 = vadd.s32 %v357, %v361
        %v363 = vadd.s32 %v362, 536870912
        %v364 = vshrl.u32 %v363, 30
        %v365 = vshll.u32 %v364, 30
        %v366 = vsub.s32 %v362, %v365
        %vm367 = vcmp.lt.s32.totalorder %v366, 0
        %v368 = vsub.s32 0, %v366
        %v369 = vsel %vm367, %v368, %v366
        %v370 = vclz %v369
        %v371 = vsub.s32 %v370, 2
        %vm372 = vcmp.gt.s32.totalorder 0, %v371
        %v373 = vsel %vm372, 0, %v371
        %v374 = vsub.s32 32, %v373
        %v375 = vshll.u32 %v366, %v373
        %v376 = vshrl.u32 %v358, %v374
        %v377 = vor.u32 %v375, %v376
        %v378 = vsub.s32 4294967266, %v373
        %v379 = vadd.s32 %v378, 127
        %v380 = vshll.u32 %v379, 23
        %v381 = vor.u32 4788187, %v380
        %v382 = vand.u32 2147483647, %v381
        %v384 = vcvt.s32.f32 %v377
        %v385 = vmul.f32 %v384, %v382
        %v386 = vxor.u32 %v385, 2147483648
        %v387 = vsel %vm266, %v386, %v385
        %v388 = vsub.s32 4, %v364
        %v389 = vsel %vm266, %v388, %v364
        %v390 = vsel %vm265, %v260, %v387
        %v391 = vsel %vm265, 0, %v389
        %v392 = vmul.f32 %v390, %v390
        %v393 = vmul.f32 %v392, -0.001358992
        %v394 = vadd.f32 %v393, 0.041655596
        %v395 = vmul.f32 %v392, %v394
        %v396 = vadd.f32 %v395, -0.4999988
        %v397 = vmul.f32 %v392, %v396
        %v398 = vadd.f32 1.0, %v397
        %v399 = vmul.f32 %v390, %v390
        %v400 = vmul.f32 %v399, -0.00019511016
        %v401 = vadd.f32 %v400, 0.008332121
        %v402 = vmul.f32 %v399, %v401
        %v403 = vadd.f32 %v402, -0.16666654
        %v404 = vmul.f32 %v399, %v403
        %v405 = vadd.f32 %v404, 1.0
        %v406 = vmul.f32 %v405, %v390
        %vm407 = vweird.f32 %v260
        %v408 = vadd.s32 %v391, 3
        %v409 = vand.u32 %v408, 3
        %vm410 = vcmp.lt.s32.totalorder %v409, 2
        %vm411 = vcmp.eq.s32.totalorder %v409, 0
        %v412 = vxor.u32 %v406, 2147483648
        %v413 = vsel %vm411, %v398, %v412
        %vm414 = vcmp.eq.s32.totalorder %v409, 2
        %v415 = vxor.u32 %v398, 2147483648
        %v416 = vsel %vm414, %v415, %v406
        %v417 = vsel %vm410, %v413, %v416
        %v418 = vsel %vm407, nan, %v417
        %v419 = vand.u32 2147483647, %v261
        %vm420 = vcmp.le.f32.partialorder %v419, 0.7853982
        %vm421 = vcmp.lt.s32.totalorder %v261, 0
        %v422 = vand.u32 %v261, 2139095040
        %v423 = vshrl.u32 %v422, 23
        %v424 = vsub.s32 %v423, 127
        %v425 = vand.u32 2147483647, %v261
        %v426 = vand.u32 %v425, 8388607
        %v427 = vor.u32 %v426, 8388608
        %v428 = vsub.s32 0, %v427
        %v429 = vadd.s32 %v424, 1
        %vm430 = vcmp.gt.s32.totalorder %v429, 0
        %v431 = vsel %vm430, %v429, 0
        %v432 = vshrl.u32 %v431, 5
        %v433 = vand.u32 %v431, 31
        %v434 = vsub.s32 32, %v433
        %v435 = vshrl.u32 683565275, %v434
        %v436 = vshll.u32 683565275, %v433
        %v437 = vshrl.u32 2475754826, %v434
        %v438 = vor.u32 %v436, %v437
        %v439 = vshll.u32 2475754826, %v433
        %v440 = vshrl.u32 2131351028, %v434
        %v441 = vor.u32 %v439, %v440
        %v442 = vshll.u32 2131351028, %v433
        %v443 = vshrl.u32 2102212464, %v434
        %v444 = vor.u32 %v442, %v443
        %v445 = vshll.u32 2102212464, %v433
        %v446 = vshrl.u32 920167782, %v434
        %v447 = vor.u32 %v445, %v446
        %v448 = vshll.u32 920167782, %v433
        %v449 = vshrl.u32 1326507024, %v434
        %v450 = vor.u32 %v448, %v449
        %vm451 = vcmp.lt.s32.totalorder %v432, 1
        %vm452 = vcmp.lt.s32.totalorder %v432, 2
        %vm453 = vcmp.lt.s32.totalorder %v432, 3
        %vm454 = vcmp.lt.s32.totalorder %v432, 4
        %v455 = vsel %vm451, %v435, %v438
        %v456 = vsel %vm454, %v444, 2102212464
        %v457 = vsel %vm453, %v441, %v456
        %v458 = vsel %vm452, %v455, %v457
        %v459 = vsel %vm451, %v438, %v441
        %v460 = vsel %vm454, %v447, 920167782
        %v461 = vsel %vm453, %v444, %v460
        %v462 = vsel %vm452, %v459, %v461
        %v463 = vsel %vm451, %v441, %v444
        %v464 = vsel %vm454, %v450, 1326507024
        %v465 = vsel %vm453, %v447, %v464
        %v466 = vsel %vm452, %v463, %v465
        %v467 = vshll.u32 %v427, 8
        %v468 = vand.u32 %v467, 65535
        %v469 = vshrl.u32 %v467, 16
        %v470 = vand.u32 %v466, 65535
        %v471 = vshrl.u32 %v466, 16
        %v472 = vmul.u32 %v468, %v470
        %v473 = vmul.u32 %v468, %v471
        %v474 = vmul.u32 %v469, %v470
        %v475 = vmul.u32 %v469, %v471
        %v476 = vshll.u32 %v473, 16
        %v477 = vshrl.u32 %v473, 16
        %v478 = vshll.u32 %v474, 16
        %v479 = vshrl.u32 %v474, 16
        %vm480 = vc.u32 %v472, %v476
        %v481 = vsel %vm480, 1, 0
        %v482 = vadd.s32 %v472, %v476
        %v483 = vadd.s32 %v475, %v481
        %vm484 = vc.u32 %v482, %v478
        %v485 = vsel %vm484, 1, 0
        %v486 = vadd.s32 %v482, %v478
        %v487 = vadd.s32 %v483, %v485
        %v488 = vadd.s32 %v487, %v477
        %v489 = vadd.s32 %v488, %v479
        %v490 = vand.u32 %v467, 65535
        %v491 = vshrl.u32 %v467, 16
        %v492 = vand.u32 %v462, 65535
        %v493 = vshrl.u32 %v462, 16
        %v494 = vmul.u32 %v490, %v492
        %v495 = vmul.u32 %v490, %v493
        %v496 = vmul.u32 %v491, %v492
        %v497 = vmul.u32 %v491, %v493
        %v498 = vshll.u32 %v495, 16
        %v499 = vshrl.u32 %v495, 16
        %v500 = vshll.u32 %v496, 16
        %v501 = vshrl.u32 %v496, 16
        %vm502 = vc.u32 %v494, %v498
        %v503 = vsel %vm502, 1, 0
        %v504 = vadd.s32 %v494, %v498
        %v505 = vadd.s32 %v497, %v503
        %vm506 = vc.u32 %v504, %v500
        %v507 = vsel %vm506, 1, 0
        %v508 = vadd.s32 %v504, %v500
        %v509 = vadd.s32 %v505, %v507
        %v510 = vadd.s32 %v509, %v499
        %v511 = vadd.s32 %v510, %v501
        %v512 = vmul.u32 %v467, %v458
        %v513 = vadd.s32 %v489, %v508
        %vm514 = vc.u32 %v489, %v508
        %v515 = vadd.s32 %v511, 1
        %v516 = vsel %vm514, %v515, %v511
        %v517 = vadd.s32 %v512, %v516
        %v518 = vadd.s32 %v517, 536870912
        %v519 = vshrl.u32 %v518, 30
        %v520 = vshll.u32 %v519, 30
        %v521 = vsub.s32 %v517, %v520
        %vm522 = vcmp.lt.s32.totalorder %v521, 0
        %v523 = vsub.s32 0, %v521
        %v524 = vsel %vm522, %v523, %v521
        %v525 = vclz %v524
        %v526 = vsub.s32 %v525, 2
        %vm527 = vcmp.gt.s32.totalorder 0, %v526
        %v528 = vsel %vm527, 0, %v526
        %v529 = vsub.s32 32, %v528
        %v530 = vshll.u32 %v521, %v528
        %v531 = vshrl.u32 %v513, %v529
        %v532 = vor.u32 %v530, %v531
        %v533 = vsub.s32 4294967266, %v528
        %v534 = vadd.s32 %v533, 127
        %v535 = vshll.u32 %v534, 23
        %v536 = vor.u32 4788187, %v535
        %v537 = vand.u32 2147483647, %v536
        %v539 = vcvt.s32.f32 %v532
        %v540 = vmul.f32 %v539, %v537
        %v541 = vxor.u32 %v540, 2147483648
        %v542 = vsel %vm421, %v541, %v540
        %v543 = vsub.s32 4, %v519
        %v544 = vsel %vm421, %v543, %v519
        %v545 = vsel %vm420, %v261, %v542
        %v546 = vsel %vm420, 0, %v544
        %v547 = vmul.f32 %v545, %v545
        %v548 = vmul.f32 %v547, -0.001358992
        %v549 = vadd.f32 %v548, 0.041655596
        %v550 = vmul.f32 %v547, %v549
        %v551 = vadd.f32 %v550, -0.4999988
        %v552 = vmul.f32 %v547, %v551
        %v553 = vadd.f32 1.0, %v552
        %v554 = vmul.f32 %v545, %v545
        %v555 = vmul.f32 %v554, -0.00019511016
        %v556 = vadd.f32 %v555, 0.008332121
        %v557 = vmul.f32 %v554, %v556
        %v558 = vadd.f32 %v557, -0.16666654
        %v559 = vmul.f32 %v554, %v558
        %v560 = vadd.f32 %v559, 1.0
        %v561 = vmul.f32 %v560, %v545
        %vm562 = vweird.f32 %v261
        %v563 = vadd.s32 %v546, 3
        %v564 = vand.u32 %v563, 3
        %vm565 = vcmp.lt.s32.totalorder %v564, 2
        %vm566 = vcmp.eq.s32.totalorder %v564, 0
        %v567 = vxor.u32 %v561, 2147483648
        %v568 = vsel %vm566, %v553, %v567
        %vm569 = vcmp.eq.s32.totalorder %v564, 2
        %v570 = vxor.u32 %v553, 2147483648
        %v571 = vsel %vm569, %v570, %v561
        %v572 = vsel %vm565, %v568, %v571
        %v573 = vsel %vm562, nan, %v572
        %v574 = vand.u32 2147483647, %v262
        %vm575 = vcmp.le.f32.partialorder %v574, 0.7853982
        %vm576 = vcmp.lt.s32.totalorder %v262, 0
        %v577 = vand.u32 %v262, 2139095040
        %v578 = vshrl.u32 %v577, 23
        %v579 = vsub.s32 %v578, 127
        %v580 = vand.u32 2147483647, %v262
        %v581 = vand.u32 %v580, 8388607
        %v582 = vor.u32 %v581, 8388608
        %v583 = vsub.s32 0, %v582
        %v584 = vadd.s32 %v579, 1
        %vm585 = vcmp.gt.s32.totalorder %v584, 0
        %v586 = vsel %vm585, %v584, 0
        %v587 = vshrl.u32 %v586, 5
        %v588 = vand.u32 %v586, 31
        %v589 = vsub.s32 32, %v588
        %v590 = vshrl.u32 683565275, %v589
        %v591 = vshll.u32 683565275, %v588
        %v592 = vshrl.u32 2475754826, %v589
        %v593 = vor.u32 %v591, %v592
        %v594 = vshll.u32 2475754826, %v588
        %v595 = vshrl.u32 2131351028, %v589
        %v596 = vor.u32 %v594, %v595
        %v597 = vshll.u32 2131351028, %v588
        %v598 = vshrl.u32 2102212464, %v589
        %v599 = vor.u32 %v597, %v598
        %v600 = vshll.u32 2102212464, %v588
        %v601 = vshrl.u32 920167782, %v589
        %v602 = vor.u32 %v600, %v601
        %v603 = vshll.u32 920167782, %v588
        %v604 = vshrl.u32 1326507024, %v589
        %v605 = vor.u32 %v603, %v604
        %vm606 = vcmp.lt.s32.totalorder %v587, 1
        %vm607 = vcmp.lt.s32.totalorder %v587, 2
        %vm608 = vcmp.lt.s32.totalorder %v587, 3
        %vm609 = vcmp.lt.s32.totalorder %v587, 4
        %v610 = vsel %vm606, %v590, %v593
        %v611 = vsel %vm609, %v599, 2102212464
        %v612 = vsel %vm608, %v596, %v611
        %v613 = vsel %vm607, %v610, %v612
        %v614 = vsel %vm606, %v593, %v596
        %v615 = vsel %vm609, %v602, 920167782
        %v616 = vsel %vm608, %v599, %v615
        %v617 = vsel %vm607, %v614, %v616
        %v618 = vsel %vm606, %v596, %v599
        %v619 = vsel %vm609, %v605, 1326507024
        %v620 = vsel %vm608, %v602, %v619
        %v621 = vsel %vm607, %v618, %v620
        %v622 = vshll.u32 %v582, 8
        %v623 = vand.u32 %v622, 65535
        %v624 = vshrl.u32 %v622, 16
        %v625 = vand.u32 %v621, 65535
        %v626 = vshrl.u32 %v621, 16
        %v627 = vmul.u32 %v623, %v625
        %v628 = vmul.u32 %v623, %v626
        %v629 = vmul.u32 %v624, %v625
        %v630 = vmul.u32 %v624, %v626
        %v631 = vshll.u32 %v628, 16
        %v632 = vshrl.u32 %v628, 16
        %v633 = vshll.u32 %v629, 16
        %v634 = vshrl.u32 %v629, 16
        %vm635 = vc.u32 %v627, %v631
        %v636 = vsel %vm635, 1, 0
        %v637 = vadd.s32 %v627, %v631
        %v638 = vadd.s32 %v630, %v636
        %vm639 = vc.u32 %v637, %v633
        %v640 = vsel %vm639, 1, 0
        %v641 = vadd.s32 %v637, %v633
        %v642 = vadd.s32 %v638, %v640
        %v643 = vadd.s32 %v642, %v632
        %v644 = vadd.s32 %v643, %v634
        %v645 = vand.u32 %v622, 65535
        %v646 = vshrl.u32 %v622, 16
        %v647 = vand.u32 %v617, 65535
        %v648 = vshrl.u32 %v617, 16
        %v649 = vmul.u32 %v645, %v647
        %v650 = vmul.u32 %v645, %v648
        %v651 = vmul.u32 %v646, %v647
        %v652 = vmul.u32 %v646, %v648
        %v653 = vshll.u32 %v650, 16
        %v654 = vshrl.u32 %v650, 16
        %v655 = vshll.u32 %v651, 16
        %v656 = vshrl.u32 %v651, 16
        %vm657 = vc.u32 %v649, %v653
        %v658 = vsel %vm657, 1, 0
        %v659 = vadd.s32 %v649, %v653
        %v660 = vadd.s32 %v652, %v658
        %vm661 = vc.u32 %v659, %v655
        %v662 = vsel %vm661, 1, 0
        %v663 = vadd.s32 %v659, %v655
        %v664 = vadd.s32 %v660, %v662
        %v665 = vadd.s32 %v664, %v654
        %v666 = vadd.s32 %v665, %v656
        %v667 = vmul.u32 %v622, %v613
        %v668 = vadd.s32 %v644, %v663
        %vm669 = vc.u32 %v644, %v663
        %v670 = vadd.s32 %v666, 1
        %v671 = vsel %vm669, %v670, %v666
        %v672 = vadd.s32 %v667, %v671
        %v673 = vadd.s32 %v672, 536870912
        %v674 = vshrl.u32 %v673, 30
        %v675 = vshll.u32 %v674, 30
        %v676 = vsub.s32 %v672, %v675
        %vm677 = vcmp.lt.s32.totalorder %v676, 0
        %v678 = vsub.s32 0, %v676
        %v679 = vsel %vm677, %v678, %v676
        %v680 = vclz %v679
        %v681 = vsub.s32 %v680, 2
        %vm682 = vcmp.gt.s32.totalorder 0, %v681
        %v683 = vsel %vm682, 0, %v681
        %v684 = vsub.s32 32, %v683
        %v685 = vshll.u32 %v676, %v683
        %v686 = vshrl.u32 %v668, %v684
        %v687 = vor.u32 %v685, %v686
        %v688 = vsub.s32 4294967266, %v683
        %v689 = vadd.s32 %v688, 127
        %v690 = vshll.u32 %v689, 23
        %v691 = vor.u32 4788187, %v690
        %v692 = vand.u32 2147483647, %v691
        %v694 = vcvt.s32.f32 %v687
        %v695 = vmul.f32 %v694, %v692
        %v696 = vxor.u32 %v695, 2147483648
        %v697 = vsel %vm576, %v696, %v695
        %v698 = vsub.s32 4, %v674
        %v699 = vsel %vm576, %v698, %v674
        %v700 = vsel %vm575, %v262, %v697
        %v701 = vsel %vm575, 0, %v699
        %v702 = vmul.f32 %v700, %v700
        %v703 = vmul.f32 %v702, -0.001358992
        %v704 = vadd.f32 %v703, 0.041655596
        %v705 = vmul.f32 %v702, %v704
        %v706 = vadd.f32 %v705, -0.4999988
        %v707 = vmul.f32 %v702, %v706
        %v708 = vadd.f32 1.0, %v707
        %v709 = vmul.f32 %v700, %v700
        %v710 = vmul.f32 %v709, -0.00019511016
        %v711 = vadd.f32 %v710, 0.008332121
        %v712 = vmul.f32 %v709, %v711
        %v713 = vadd.f32 %v712, -0.16666654
        %v714 = vmul.f32 %v709, %v713
        %v715 = vadd.f32 %v714, 1.0
        %v716 = vmul.f32 %v715, %v700
        %vm717 = vweird.f32 %v262
        %v718 = vadd.s32 %v701, 3
        %v719 = vand.u32 %v718, 3
        %vm720 = vcmp.lt.s32.totalorder %v719, 2
        %vm721 = vcmp.eq.s32.totalorder %v719, 0
        %v722 = vxor.u32 %v716, 2147483648
        %v723 = vsel %vm721, %v708, %v722
        %vm724 = vcmp.eq.s32.totalorder %v719, 2
        %v725 = vxor.u32 %v708, 2147483648
        %v726 = vsel %vm724, %v725, %v716
        %v727 = vsel %vm720, %v723, %v726
        %v728 = vsel %vm717, nan, %v727
        %v729 = vand.u32 2147483647, %v263
        %vm730 = vcmp.le.f32.partialorder %v729, 0.7853982
        %vm731 = vcmp.lt.s32.totalorder %v263, 0
        %v732 = vand.u32 %v263, 2139095040
        %v733 = vshrl.u32 %v732, 23
        %v734 = vsub.s32 %v733, 127
        %v735 = vand.u32 2147483647, %v263
        %v736 = vand.u32 %v735, 8388607
        %v737 = vor.u32 %v736, 8388608
        %v738 = vsub.s32 0, %v737
        %v739 = vadd.s32 %v734, 1
        %vm740 = vcmp.gt.s32.totalorder %v739, 0
        %v741 = vsel %vm740, %v739, 0
        %v742 = vshrl.u32 %v741, 5
        %v743 = vand.u32 %v741, 31
        %v744 = vsub.s32 32, %v743
        %v745 = vshrl.u32 683565275, %v744
        %v746 = vshll.u32 683565275, %v743
        %v747 = vshrl.u32 2475754826, %v744
        %v748 = vor.u32 %v746, %v747
        %v749 = vshll.u32 2475754826, %v743
        %v750 = vshrl.u32 2131351028, %v744
        %v751 = vor.u32 %v749, %v750
        %v752 = vshll.u32 2131351028, %v743
        %v753 = vshrl.u32 2102212464, %v744
        %v754 = vor.u32 %v752, %v753
        %v755 = vshll.u32 2102212464, %v743
        %v756 = vshrl.u32 920167782, %v744
        %v757 = vor.u32 %v755, %v756
        %v758 = vshll.u32 920167782, %v743
        %v759 = vshrl.u32 1326507024, %v744
        %v760 = vor.u32 %v758, %v759
        %vm761 = vcmp.lt.s32.totalorder %v742, 1
        %vm762 = vcmp.lt.s32.totalorder %v742, 2
        %vm763 = vcmp.lt.s32.totalorder %v742, 3
        %vm764 = vcmp.lt.s32.totalorder %v742, 4
        %v765 = vsel %vm761, %v745, %v748
        %v766 = vsel %vm764, %v754, 2102212464
        %v767 = vsel %vm763, %v751, %v766
        %v768 = vsel %vm762, %v765, %v767
        %v769 = vsel %vm761, %v748, %v751
        %v770 = vsel %vm764, %v757, 920167782
        %v771 = vsel %vm763, %v754, %v770
        %v772 = vsel %vm762, %v769, %v771
        %v773 = vsel %vm761, %v751, %v754
        %v774 = vsel %vm764, %v760, 1326507024
        %v775 = vsel %vm763, %v757, %v774
        %v776 = vsel %vm762, %v773, %v775
        %v777 = vshll.u32 %v737, 8
        %v778 = vand.u32 %v777, 65535
        %v779 = vshrl.u32 %v777, 16
        %v780 = vand.u32 %v776, 65535
        %v781 = vshrl.u32 %v776, 16
        %v782 = vmul.u32 %v778, %v780
        %v783 = vmul.u32 %v778, %v781
        %v784 = vmul.u32 %v779, %v780
        %v785 = vmul.u32 %v779, %v781
        %v786 = vshll.u32 %v783, 16
        %v787 = vshrl.u32 %v783, 16
        %v788 = vshll.u32 %v784, 16
        %v789 = vshrl.u32 %v784, 16
        %vm790 = vc.u32 %v782, %v786
        %v791 = vsel %vm790, 1, 0
        %v792 = vadd.s32 %v782, %v786
        %v793 = vadd.s32 %v785, %v791
        %vm794 = vc.u32 %v792, %v788
        %v795 = vsel %vm794, 1, 0
        %v796 = vadd.s32 %v792, %v788
        %v797 = vadd.s32 %v793, %v795
        %v798 = vadd.s32 %v797, %v787
        %v799 = vadd.s32 %v798, %v789
        %v800 = vand.u32 %v777, 65535
        %v801 = vshrl.u32 %v777, 16
        %v802 = vand.u32 %v772, 65535
        %v803 = vshrl.u32 %v772, 16
        %v804 = vmul.u32 %v800, %v802
        %v805 = vmul.u32 %v800, %v803
        %v806 = vmul.u32 %v801, %v802
        %v807 = vmul.u32 %v801, %v803
        %v808 = vshll.u32 %v805, 16
        %v809 = vshrl.u32 %v805, 16
        %v810 = vshll.u32 %v806, 16
        %v811 = vshrl.u32 %v806, 16
        %vm812 = vc.u32 %v804, %v808
        %v813 = vsel %vm812, 1, 0
        %v814 = vadd.s32 %v804, %v808
        %v815 = vadd.s32 %v807, %v813
        %vm816 = vc.u32 %v814, %v810
        %v817 = vsel %vm816, 1, 0
        %v818 = vadd.s32 %v814, %v810
        %v819 = vadd.s32 %v815, %v817
        %v820 = vadd.s32 %v819, %v809
        %v821 = vadd.s32 %v820, %v811
        %v822 = vmul.u32 %v777, %v768
        %v823 = vadd.s32 %v799, %v818
        %vm824 = vc.u32 %v799, %v818
        %v825 = vadd.s32 %v821, 1
        %v826 = vsel %vm824, %v825, %v821
        %v827 = vadd.s32 %v822, %v826
        %v828 = vadd.s32 %v827, 536870912
        %v829 = vshrl.u32 %v828, 30
        %v830 = vshll.u32 %v829, 30
        %v831 = vsub.s32 %v827, %v830
        %vm832 = vcmp.lt.s32.totalorder %v831, 0
        %v833 = vsub.s32 0, %v831
        %v834 = vsel %vm832, %v833, %v831
        %v835 = vclz %v834
        %v836 = vsub.s32 %v835, 2
        %vm837 = vcmp.gt.s32.totalorder 0, %v836
        %v838 = vsel %vm837, 0, %v836
        %v839 = vsub.s32 32, %v838
        %v840 = vshll.u32 %v831, %v838
        %v841 = vshrl.u32 %v823, %v839
        %v842 = vor.u32 %v840, %v841
        %v843 = vsub.s32 4294967266, %v838
        %v844 = vadd.s32 %v843, 127
        %v845 = vshll.u32 %v844, 23
        %v846 = vor.u32 4788187, %v845
        %v847 = vand.u32 2147483647, %v846
        %v849 = vcvt.s32.f32 %v842
        %v850 = vmul.f32 %v849, %v847
        %v851 = vxor.u32 %v850, 2147483648
        %v852 = vsel %vm731, %v851, %v850
        %v853 = vsub.s32 4, %v829
        %v854 = vsel %vm731, %v853, %v829
        %v855 = vsel %vm730, %v263, %v852
        %v856 = vsel %vm730, 0, %v854
        %v857 = vmul.f32 %v855, %v855
        %v858 = vmul.f32 %v857, -0.001358992
        %v859 = vadd.f32 %v858, 0.041655596
        %v860 = vmul.f32 %v857, %v859
        %v861 = vadd.f32 %v860, -0.4999988
        %v862 = vmul.f32 %v857, %v861
        %v863 = vadd.f32 1.0, %v862
        %v864 = vmul.f32 %v855, %v855
        %v865 = vmul.f32 %v864, -0.00019511016
        %v866 = vadd.f32 %v865, 0.008332121
        %v867 = vmul.f32 %v864, %v866
        %v868 = vadd.f32 %v867, -0.16666654
        %v869 = vmul.f32 %v864, %v868
        %v870 = vadd.f32 %v869, 1.0
        %v871 = vmul.f32 %v870, %v855
        %vm872 = vweird.f32 %v263
        %v873 = vadd.s32 %v856, 3
        %v874 = vand.u32 %v873, 3
        %vm875 = vcmp.lt.s32.totalorder %v874, 2
        %vm876 = vcmp.eq.s32.totalorder %v874, 0
        %v877 = vxor.u32 %v871, 2147483648
        %v878 = vsel %vm876, %v863, %v877
        %vm879 = vcmp.eq.s32.totalorder %v874, 2
        %v880 = vxor.u32 %v863, 2147483648
        %v881 = vsel %vm879, %v880, %v871
        %v882 = vsel %vm875, %v878, %v881
        %v883 = vsel %vm872, nan, %v882
        %884 = vst [vmem:[%s197] sm:$0xff] %v418
        %885 = vst [vmem:[%s197 + $0x8] sm:$0xff] %v573
        %886 = vst [vmem:[%s197 + $0x10] sm:$0xff] %v728
        %887 = vst [vmem:[%s197 + $0x18] sm:$0xff] %v883
        %v888 = vld [vmem:[%s203] sm:$0x1]
        %v890 = vperm.slane %v888, 0
        %v892 = vmul.f32 %v216, %v890
        %v893 = vmul.f32 %v221, %v890
        %v894 = vmul.f32 %v226, %v890
        %v895 = vmul.f32 %v231, %v890
        %v896 = vadd.f32 %v892, %v243
        %v897 = vadd.f32 %v893, %v248
        %v898 = vadd.f32 %v894, %v253
        %v899 = vadd.f32 %v895, %v258
        %v900 = vand.u32 2147483647, %v896
        %vm901 = vcmp.le.f32.partialorder %v900, 0.7853982
        %vm902 = vcmp.lt.s32.totalorder %v896, 0
        %v903 = vand.u32 %v896, 2139095040
        %v904 = vshrl.u32 %v903, 23
        %v905 = vsub.s32 %v904, 127
        %v906 = vand.u32 2147483647, %v896
        %v907 = vand.u32 %v906, 8388607
        %v908 = vor.u32 %v907, 8388608
        %v909 = vsub.s32 0, %v908
        %v910 = vadd.s32 %v905, 1
        %vm911 = vcmp.gt.s32.totalorder %v910, 0
        %v912 = vsel %vm911, %v910, 0
        %v913 = vshrl.u32 %v912, 5
        %v914 = vand.u32 %v912, 31
        %v915 = vsub.s32 32, %v914
        %v916 = vshrl.u32 683565275, %v915
        %v917 = vshll.u32 683565275, %v914
        %v918 = vshrl.u32 2475754826, %v915
        %v919 = vor.u32 %v917, %v918
        %v920 = vshll.u32 2475754826, %v914
        %v921 = vshrl.u32 2131351028, %v915
        %v922 = vor.u32 %v920, %v921
        %v923 = vshll.u32 2131351028, %v914
        %v924 = vshrl.u32 2102212464, %v915
        %v925 = vor.u32 %v923, %v924
        %v926 = vshll.u32 2102212464, %v914
        %v927 = vshrl.u32 920167782, %v915
        %v928 = vor.u32 %v926, %v927
        %v929 = vshll.u32 920167782, %v914
        %v930 = vshrl.u32 1326507024, %v915
        %v931 = vor.u32 %v929, %v930
        %vm932 = vcmp.lt.s32.totalorder %v913, 1
        %vm933 = vcmp.lt.s32.totalorder %v913, 2
        %vm934 = vcmp.lt.s32.totalorder %v913, 3
        %vm935 = vcmp.lt.s32.totalorder %v913, 4
        %v936 = vsel %vm932, %v916, %v919
        %v937 = vsel %vm935, %v925, 2102212464
        %v938 = vsel %vm934, %v922, %v937
        %v939 = vsel %vm933, %v936, %v938
        %v940 = vsel %vm932, %v919, %v922
        %v941 = vsel %vm935, %v928, 920167782
        %v942 = vsel %vm934, %v925, %v941
        %v943 = vsel %vm933, %v940, %v942
        %v944 = vsel %vm932, %v922, %v925
        %v945 = vsel %vm935, %v931, 1326507024
        %v946 = vsel %vm934, %v928, %v945
        %v947 = vsel %vm933, %v944, %v946
        %v948 = vshll.u32 %v908, 8
        %v949 = vand.u32 %v948, 65535
        %v950 = vshrl.u32 %v948, 16
        %v951 = vand.u32 %v947, 65535
        %v952 = vshrl.u32 %v947, 16
        %v953 = vmul.u32 %v949, %v951
        %v954 = vmul.u32 %v949, %v952
        %v955 = vmul.u32 %v950, %v951
        %v956 = vmul.u32 %v950, %v952
        %v957 = vshll.u32 %v954, 16
        %v958 = vshrl.u32 %v954, 16
        %v959 = vshll.u32 %v955, 16
        %v960 = vshrl.u32 %v955, 16
        %vm961 = vc.u32 %v953, %v957
        %v962 = vsel %vm961, 1, 0
        %v963 = vadd.s32 %v953, %v957
        %v964 = vadd.s32 %v956, %v962
        %vm965 = vc.u32 %v963, %v959
        %v966 = vsel %vm965, 1, 0
        %v967 = vadd.s32 %v963, %v959
        %v968 = vadd.s32 %v964, %v966
        %v969 = vadd.s32 %v968, %v958
        %v970 = vadd.s32 %v969, %v960
        %v971 = vand.u32 %v948, 65535
        %v972 = vshrl.u32 %v948, 16
        %v973 = vand.u32 %v943, 65535
        %v974 = vshrl.u32 %v943, 16
        %v975 = vmul.u32 %v971, %v973
        %v976 = vmul.u32 %v971, %v974
        %v977 = vmul.u32 %v972, %v973
        %v978 = vmul.u32 %v972, %v974
        %v979 = vshll.u32 %v976, 16
        %v980 = vshrl.u32 %v976, 16
        %v981 = vshll.u32 %v977, 16
        %v982 = vshrl.u32 %v977, 16
        %vm983 = vc.u32 %v975, %v979
        %v984 = vsel %vm983, 1, 0
        %v985 = vadd.s32 %v975, %v979
        %v986 = vadd.s32 %v978, %v984
        %vm987 = vc.u32 %v985, %v981
        %v988 = vsel %vm987, 1, 0
        %v989 = vadd.s32 %v985, %v981
        %v990 = vadd.s32 %v986, %v988
        %v991 = vadd.s32 %v990, %v980
        %v992 = vadd.s32 %v991, %v982
        %v993 = vmul.u32 %v948, %v939
        %v994 = vadd.s32 %v970, %v989
        %vm995 = vc.u32 %v970, %v989
        %v996 = vadd.s32 %v992, 1
        %v997 = vsel %vm995, %v996, %v992
        %v998 = vadd.s32 %v993, %v997
        %v999 = vadd.s32 %v998, 536870912
        %v1000 = vshrl.u32 %v999, 30
        %v1001 = vshll.u32 %v1000, 30
        %v1002 = vsub.s32 %v998, %v1001
        %vm1003 = vcmp.lt.s32.totalorder %v1002, 0
        %v1004 = vsub.s32 0, %v1002
        %v1005 = vsel %vm1003, %v1004, %v1002
        %v1006 = vclz %v1005
        %v1007 = vsub.s32 %v1006, 2
        %vm1008 = vcmp.gt.s32.totalorder 0, %v1007
        %v1009 = vsel %vm1008, 0, %v1007
        %v1010 = vsub.s32 32, %v1009
        %v1011 = vshll.u32 %v1002, %v1009
        %v1012 = vshrl.u32 %v994, %v1010
        %v1013 = vor.u32 %v1011, %v1012
        %v1014 = vsub.s32 4294967266, %v1009
        %v1015 = vadd.s32 %v1014, 127
        %v1016 = vshll.u32 %v1015, 23
        %v1017 = vor.u32 4788187, %v1016
        %v1018 = vand.u32 2147483647, %v1017
        %v1020 = vcvt.s32.f32 %v1013
        %v1021 = vmul.f32 %v1020, %v1018
        %v1022 = vxor.u32 %v1021, 2147483648
        %v1023 = vsel %vm902, %v1022, %v1021
        %v1024 = vsub.s32 4, %v1000
        %v1025 = vsel %vm902, %v1024, %v1000
        %v1026 = vsel %vm901, %v896, %v1023
        %v1027 = vsel %vm901, 0, %v1025
        %v1028 = vmul.f32 %v1026, %v1026
        %v1029 = vmul.f32 %v1028, -0.001358992
        %v1030 = vadd.f32 %v1029, 0.041655596
        %v1031 = vmul.f32 %v1028, %v1030
        %v1032 = vadd.f32 %v1031, -0.4999988
        %v1033 = vmul.f32 %v1028, %v1032
        %v1034 = vadd.f32 1.0, %v1033
        %v1035 = vmul.f32 %v1026, %v1026
        %v1036 = vmul.f32 %v1035, -0.00019511016
        %v1037 = vadd.f32 %v1036, 0.008332121
        %v1038 = vmul.f32 %v1035, %v1037
        %v1039 = vadd.f32 %v1038, -0.16666654
        %v1040 = vmul.f32 %v1035, %v1039
        %v1041 = vadd.f32 %v1040, 1.0
        %v1042 = vmul.f32 %v1041, %v1026
        %vm1043 = vweird.f32 %v896
        %v1044 = vadd.s32 %v1027, 3
        %v1045 = vand.u32 %v1044, 3
        %vm1046 = vcmp.lt.s32.totalorder %v1045, 2
        %vm1047 = vcmp.eq.s32.totalorder %v1045, 0
        %v1048 = vxor.u32 %v1042, 2147483648
        %v1049 = vsel %vm1047, %v1034, %v1048
        %vm1050 = vcmp.eq.s32.totalorder %v1045, 2
        %v1051 = vxor.u32 %v1034, 2147483648
        %v1052 = vsel %vm1050, %v1051, %v1042
        %v1053 = vsel %vm1046, %v1049, %v1052
        %v1054 = vsel %vm1043, nan, %v1053
        %v1055 = vand.u32 2147483647, %v897
        %vm1056 = vcmp.le.f32.partialorder %v1055, 0.7853982
        %vm1057 = vcmp.lt.s32.totalorder %v897, 0
        %v1058 = vand.u32 %v897, 2139095040
        %v1059 = vshrl.u32 %v1058, 23
        %v1060 = vsub.s32 %v1059, 127
        %v1061 = vand.u32 2147483647, %v897
        %v1062 = vand.u32 %v1061, 8388607
        %v1063 = vor.u32 %v1062, 8388608
        %v1064 = vsub.s32 0, %v1063
        %v1065 = vadd.s32 %v1060, 1
        %vm1066 = vcmp.gt.s32.totalorder %v1065, 0
        %v1067 = vsel %vm1066, %v1065, 0
        %v1068 = vshrl.u32 %v1067, 5
        %v1069 = vand.u32 %v1067, 31
        %v1070 = vsub.s32 32, %v1069
        %v1071 = vshrl.u32 683565275, %v1070
        %v1072 = vshll.u32 683565275, %v1069
        %v1073 = vshrl.u32 2475754826, %v1070
        %v1074 = vor.u32 %v1072, %v1073
        %v1075 = vshll.u32 2475754826, %v1069
        %v1076 = vshrl.u32 2131351028, %v1070
        %v1077 = vor.u32 %v1075, %v1076
        %v1078 = vshll.u32 2131351028, %v1069
        %v1079 = vshrl.u32 2102212464, %v1070
        %v1080 = vor.u32 %v1078, %v1079
        %v1081 = vshll.u32 2102212464, %v1069
        %v1082 = vshrl.u32 920167782, %v1070
        %v1083 = vor.u32 %v1081, %v1082
        %v1084 = vshll.u32 920167782, %v1069
        %v1085 = vshrl.u32 1326507024, %v1070
        %v1086 = vor.u32 %v1084, %v1085
        %vm1087 = vcmp.lt.s32.totalorder %v1068, 1
        %vm1088 = vcmp.lt.s32.totalorder %v1068, 2
        %vm1089 = vcmp.lt.s32.totalorder %v1068, 3
        %vm1090 = vcmp.lt.s32.totalorder %v1068, 4
        %v1091 = vsel %vm1087, %v1071, %v1074
        %v1092 = vsel %vm1090, %v1080, 2102212464
        %v1093 = vsel %vm1089, %v1077, %v1092
        %v1094 = vsel %vm1088, %v1091, %v1093
        %v1095 = vsel %vm1087, %v1074, %v1077
        %v1096 = vsel %vm1090, %v1083, 920167782
        %v1097 = vsel %vm1089, %v1080, %v1096
        %v1098 = vsel %vm1088, %v1095, %v1097
        %v1099 = vsel %vm1087, %v1077, %v1080
        %v1100 = vsel %vm1090, %v1086, 1326507024
        %v1101 = vsel %vm1089, %v1083, %v1100
        %v1102 = vsel %vm1088, %v1099, %v1101
        %v1103 = vshll.u32 %v1063, 8
        %v1104 = vand.u32 %v1103, 65535
        %v1105 = vshrl.u32 %v1103, 16
        %v1106 = vand.u32 %v1102, 65535
        %v1107 = vshrl.u32 %v1102, 16
        %v1108 = vmul.u32 %v1104, %v1106
        %v1109 = vmul.u32 %v1104, %v1107
        %v1110 = vmul.u32 %v1105, %v1106
        %v1111 = vmul.u32 %v1105, %v1107
        %v1112 = vshll.u32 %v1109, 16
        %v1113 = vshrl.u32 %v1109, 16
        %v1114 = vshll.u32 %v1110, 16
        %v1115 = vshrl.u32 %v1110, 16
        %vm1116 = vc.u32 %v1108, %v1112
        %v1117 = vsel %vm1116, 1, 0
        %v1118 = vadd.s32 %v1108, %v1112
        %v1119 = vadd.s32 %v1111, %v1117
        %vm1120 = vc.u32 %v1118, %v1114
        %v1121 = vsel %vm1120, 1, 0
        %v1122 = vadd.s32 %v1118, %v1114
        %v1123 = vadd.s32 %v1119, %v1121
        %v1124 = vadd.s32 %v1123, %v1113
        %v1125 = vadd.s32 %v1124, %v1115
        %v1126 = vand.u32 %v1103, 65535
        %v1127 = vshrl.u32 %v1103, 16
        %v1128 = vand.u32 %v1098, 65535
        %v1129 = vshrl.u32 %v1098, 16
        %v1130 = vmul.u32 %v1126, %v1128
        %v1131 = vmul.u32 %v1126, %v1129
        %v1132 = vmul.u32 %v1127, %v1128
        %v1133 = vmul.u32 %v1127, %v1129
        %v1134 = vshll.u32 %v1131, 16
        %v1135 = vshrl.u32 %v1131, 16
        %v1136 = vshll.u32 %v1132, 16
        %v1137 = vshrl.u32 %v1132, 16
        %vm1138 = vc.u32 %v1130, %v1134
        %v1139 = vsel %vm1138, 1, 0
        %v1140 = vadd.s32 %v1130, %v1134
        %v1141 = vadd.s32 %v1133, %v1139
        %vm1142 = vc.u32 %v1140, %v1136
        %v1143 = vsel %vm1142, 1, 0
        %v1144 = vadd.s32 %v1140, %v1136
        %v1145 = vadd.s32 %v1141, %v1143
        %v1146 = vadd.s32 %v1145, %v1135
        %v1147 = vadd.s32 %v1146, %v1137
        %v1148 = vmul.u32 %v1103, %v1094
        %v1149 = vadd.s32 %v1125, %v1144
        %vm1150 = vc.u32 %v1125, %v1144
        %v1151 = vadd.s32 %v1147, 1
        %v1152 = vsel %vm1150, %v1151, %v1147
        %v1153 = vadd.s32 %v1148, %v1152
        %v1154 = vadd.s32 %v1153, 536870912
        %v1155 = vshrl.u32 %v1154, 30
        %v1156 = vshll.u32 %v1155, 30
        %v1157 = vsub.s32 %v1153, %v1156
        %vm1158 = vcmp.lt.s32.totalorder %v1157, 0
        %v1159 = vsub.s32 0, %v1157
        %v1160 = vsel %vm1158, %v1159, %v1157
        %v1161 = vclz %v1160
        %v1162 = vsub.s32 %v1161, 2
        %vm1163 = vcmp.gt.s32.totalorder 0, %v1162
        %v1164 = vsel %vm1163, 0, %v1162
        %v1165 = vsub.s32 32, %v1164
        %v1166 = vshll.u32 %v1157, %v1164
        %v1167 = vshrl.u32 %v1149, %v1165
        %v1168 = vor.u32 %v1166, %v1167
        %v1169 = vsub.s32 4294967266, %v1164
        %v1170 = vadd.s32 %v1169, 127
        %v1171 = vshll.u32 %v1170, 23
        %v1172 = vor.u32 4788187, %v1171
        %v1173 = vand.u32 2147483647, %v1172
        %v1175 = vcvt.s32.f32 %v1168
        %v1176 = vmul.f32 %v1175, %v1173
        %v1177 = vxor.u32 %v1176, 2147483648
        %v1178 = vsel %vm1057, %v1177, %v1176
        %v1179 = vsub.s32 4, %v1155
        %v1180 = vsel %vm1057, %v1179, %v1155
        %v1181 = vsel %vm1056, %v897, %v1178
        %v1182 = vsel %vm1056, 0, %v1180
        %v1183 = vmul.f32 %v1181, %v1181
        %v1184 = vmul.f32 %v1183, -0.001358992
        %v1185 = vadd.f32 %v1184, 0.041655596
        %v1186 = vmul.f32 %v1183, %v1185
        %v1187 = vadd.f32 %v1186, -0.4999988
        %v1188 = vmul.f32 %v1183, %v1187
        %v1189 = vadd.f32 1.0, %v1188
        %v1190 = vmul.f32 %v1181, %v1181
        %v1191 = vmul.f32 %v1190, -0.00019511016
        %v1192 = vadd.f32 %v1191, 0.008332121
        %v1193 = vmul.f32 %v1190, %v1192
        %v1194 = vadd.f32 %v1193, -0.16666654
        %v1195 = vmul.f32 %v1190, %v1194
        %v1196 = vadd.f32 %v1195, 1.0
        %v1197 = vmul.f32 %v1196, %v1181
        %vm1198 = vweird.f32 %v897
        %v1199 = vadd.s32 %v1182, 3
        %v1200 = vand.u32 %v1199, 3
        %vm1201 = vcmp.lt.s32.totalorder %v1200, 2
        %vm1202 = vcmp.eq.s32.totalorder %v1200, 0
        %v1203 = vxor.u32 %v1197, 2147483648
        %v1204 = vsel %vm1202, %v1189, %v1203
        %vm1205 = vcmp.eq.s32.totalorder %v1200, 2
        %v1206 = vxor.u32 %v1189, 2147483648
        %v1207 = vsel %vm1205, %v1206, %v1197
        %v1208 = vsel %vm1201, %v1204, %v1207
        %v1209 = vsel %vm1198, nan, %v1208
        %v1210 = vand.u32 2147483647, %v898
        %vm1211 = vcmp.le.f32.partialorder %v1210, 0.7853982
        %vm1212 = vcmp.lt.s32.totalorder %v898, 0
        %v1213 = vand.u32 %v898, 2139095040
        %v1214 = vshrl.u32 %v1213, 23
        %v1215 = vsub.s32 %v1214, 127
        %v1216 = vand.u32 2147483647, %v898
        %v1217 = vand.u32 %v1216, 8388607
        %v1218 = vor.u32 %v1217, 8388608
        %v1219 = vsub.s32 0, %v1218
        %v1220 = vadd.s32 %v1215, 1
        %vm1221 = vcmp.gt.s32.totalorder %v1220, 0
        %v1222 = vsel %vm1221, %v1220, 0
        %v1223 = vshrl.u32 %v1222, 5
        %v1224 = vand.u32 %v1222, 31
        %v1225 = vsub.s32 32, %v1224
        %v1226 = vshrl.u32 683565275, %v1225
        %v1227 = vshll.u32 683565275, %v1224
        %v1228 = vshrl.u32 2475754826, %v1225
        %v1229 = vor.u32 %v1227, %v1228
        %v1230 = vshll.u32 2475754826, %v1224
        %v1231 = vshrl.u32 2131351028, %v1225
        %v1232 = vor.u32 %v1230, %v1231
        %v1233 = vshll.u32 2131351028, %v1224
        %v1234 = vshrl.u32 2102212464, %v1225
        %v1235 = vor.u32 %v1233, %v1234
        %v1236 = vshll.u32 2102212464, %v1224
        %v1237 = vshrl.u32 920167782, %v1225
        %v1238 = vor.u32 %v1236, %v1237
        %v1239 = vshll.u32 920167782, %v1224
        %v1240 = vshrl.u32 1326507024, %v1225
        %v1241 = vor.u32 %v1239, %v1240
        %vm1242 = vcmp.lt.s32.totalorder %v1223, 1
        %vm1243 = vcmp.lt.s32.totalorder %v1223, 2
        %vm1244 = vcmp.lt.s32.totalorder %v1223, 3
        %vm1245 = vcmp.lt.s32.totalorder %v1223, 4
        %v1246 = vsel %vm1242, %v1226, %v1229
        %v1247 = vsel %vm1245, %v1235, 2102212464
        %v1248 = vsel %vm1244, %v1232, %v1247
        %v1249 = vsel %vm1243, %v1246, %v1248
        %v1250 = vsel %vm1242, %v1229, %v1232
        %v1251 = vsel %vm1245, %v1238, 920167782
        %v1252 = vsel %vm1244, %v1235, %v1251
        %v1253 = vsel %vm1243, %v1250, %v1252
        %v1254 = vsel %vm1242, %v1232, %v1235
        %v1255 = vsel %vm1245, %v1241, 1326507024
        %v1256 = vsel %vm1244, %v1238, %v1255
        %v1257 = vsel %vm1243, %v1254, %v1256
        %v1258 = vshll.u32 %v1218, 8
        %v1259 = vand.u32 %v1258, 65535
        %v1260 = vshrl.u32 %v1258, 16
        %v1261 = vand.u32 %v1257, 65535
        %v1262 = vshrl.u32 %v1257, 16
        %v1263 = vmul.u32 %v1259, %v1261
        %v1264 = vmul.u32 %v1259, %v1262
        %v1265 = vmul.u32 %v1260, %v1261
        %v1266 = vmul.u32 %v1260, %v1262
        %v1267 = vshll.u32 %v1264, 16
        %v1268 = vshrl.u32 %v1264, 16
        %v1269 = vshll.u32 %v1265, 16
        %v1270 = vshrl.u32 %v1265, 16
        %vm1271 = vc.u32 %v1263, %v1267
        %v1272 = vsel %vm1271, 1, 0
        %v1273 = vadd.s32 %v1263, %v1267
        %v1274 = vadd.s32 %v1266, %v1272
        %vm1275 = vc.u32 %v1273, %v1269
        %v1276 = vsel %vm1275, 1, 0
        %v1277 = vadd.s32 %v1273, %v1269
        %v1278 = vadd.s32 %v1274, %v1276
        %v1279 = vadd.s32 %v1278, %v1268
        %v1280 = vadd.s32 %v1279, %v1270
        %v1281 = vand.u32 %v1258, 65535
        %v1282 = vshrl.u32 %v1258, 16
        %v1283 = vand.u32 %v1253, 65535
        %v1284 = vshrl.u32 %v1253, 16
        %v1285 = vmul.u32 %v1281, %v1283
        %v1286 = vmul.u32 %v1281, %v1284
        %v1287 = vmul.u32 %v1282, %v1283
        %v1288 = vmul.u32 %v1282, %v1284
        %v1289 = vshll.u32 %v1286, 16
        %v1290 = vshrl.u32 %v1286, 16
        %v1291 = vshll.u32 %v1287, 16
        %v1292 = vshrl.u32 %v1287, 16
        %vm1293 = vc.u32 %v1285, %v1289
        %v1294 = vsel %vm1293, 1, 0
        %v1295 = vadd.s32 %v1285, %v1289
        %v1296 = vadd.s32 %v1288, %v1294
        %vm1297 = vc.u32 %v1295, %v1291
        %v1298 = vsel %vm1297, 1, 0
        %v1299 = vadd.s32 %v1295, %v1291
        %v1300 = vadd.s32 %v1296, %v1298
        %v1301 = vadd.s32 %v1300, %v1290
        %v1302 = vadd.s32 %v1301, %v1292
        %v1303 = vmul.u32 %v1258, %v1249
        %v1304 = vadd.s32 %v1280, %v1299
        %vm1305 = vc.u32 %v1280, %v1299
        %v1306 = vadd.s32 %v1302, 1
        %v1307 = vsel %vm1305, %v1306, %v1302
        %v1308 = vadd.s32 %v1303, %v1307
        %v1309 = vadd.s32 %v1308, 536870912
        %v1310 = vshrl.u32 %v1309, 30
        %v1311 = vshll.u32 %v1310, 30
        %v1312 = vsub.s32 %v1308, %v1311
        %vm1313 = vcmp.lt.s32.totalorder %v1312, 0
        %v1314 = vsub.s32 0, %v1312
        %v1315 = vsel %vm1313, %v1314, %v1312
        %v1316 = vclz %v1315
        %v1317 = vsub.s32 %v1316, 2
        %vm1318 = vcmp.gt.s32.totalorder 0, %v1317
        %v1319 = vsel %vm1318, 0, %v1317
        %v1320 = vsub.s32 32, %v1319
        %v1321 = vshll.u32 %v1312, %v1319
        %v1322 = vshrl.u32 %v1304, %v1320
        %v1323 = vor.u32 %v1321, %v1322
        %v1324 = vsub.s32 4294967266, %v1319
        %v1325 = vadd.s32 %v1324, 127
        %v1326 = vshll.u32 %v1325, 23
        %v1327 = vor.u32 4788187, %v1326
        %v1328 = vand.u32 2147483647, %v1327
        %v1330 = vcvt.s32.f32 %v1323
        %v1331 = vmul.f32 %v1330, %v1328
        %v1332 = vxor.u32 %v1331, 2147483648
        %v1333 = vsel %vm1212, %v1332, %v1331
        %v1334 = vsub.s32 4, %v1310
        %v1335 = vsel %vm1212, %v1334, %v1310
        %v1336 = vsel %vm1211, %v898, %v1333
        %v1337 = vsel %vm1211, 0, %v1335
        %v1338 = vmul.f32 %v1336, %v1336
        %v1339 = vmul.f32 %v1338, -0.001358992
        %v1340 = vadd.f32 %v1339, 0.041655596
        %v1341 = vmul.f32 %v1338, %v1340
        %v1342 = vadd.f32 %v1341, -0.4999988
        %v1343 = vmul.f32 %v1338, %v1342
        %v1344 = vadd.f32 1.0, %v1343
        %v1345 = vmul.f32 %v1336, %v1336
        %v1346 = vmul.f32 %v1345, -0.00019511016
        %v1347 = vadd.f32 %v1346, 0.008332121
        %v1348 = vmul.f32 %v1345, %v1347
        %v1349 = vadd.f32 %v1348, -0.16666654
        %v1350 = vmul.f32 %v1345, %v1349
        %v1351 = vadd.f32 %v1350, 1.0
        %v1352 = vmul.f32 %v1351, %v1336
        %vm1353 = vweird.f32 %v898
        %v1354 = vadd.s32 %v1337, 3
        %v1355 = vand.u32 %v1354, 3
        %vm1356 = vcmp.lt.s32.totalorder %v1355, 2
        %vm1357 = vcmp.eq.s32.totalorder %v1355, 0
        %v1358 = vxor.u32 %v1352, 2147483648
        %v1359 = vsel %vm1357, %v1344, %v1358
        %vm1360 = vcmp.eq.s32.totalorder %v1355, 2
        %v1361 = vxor.u32 %v1344, 2147483648
        %v1362 = vsel %vm1360, %v1361, %v1352
        %v1363 = vsel %vm1356, %v1359, %v1362
        %v1364 = vsel %vm1353, nan, %v1363
        %v1365 = vand.u32 2147483647, %v899
        %vm1366 = vcmp.le.f32.partialorder %v1365, 0.7853982
        %vm1367 = vcmp.lt.s32.totalorder %v899, 0
        %v1368 = vand.u32 %v899, 2139095040
        %v1369 = vshrl.u32 %v1368, 23
        %v1370 = vsub.s32 %v1369, 127
        %v1371 = vand.u32 2147483647, %v899
        %v1372 = vand.u32 %v1371, 8388607
        %v1373 = vor.u32 %v1372, 8388608
        %v1374 = vsub.s32 0, %v1373
        %v1375 = vadd.s32 %v1370, 1
        %vm1376 = vcmp.gt.s32.totalorder %v1375, 0
        %v1377 = vsel %vm1376, %v1375, 0
        %v1378 = vshrl.u32 %v1377, 5
        %v1379 = vand.u32 %v1377, 31
        %v1380 = vsub.s32 32, %v1379
        %v1381 = vshrl.u32 683565275, %v1380
        %v1382 = vshll.u32 683565275, %v1379
        %v1383 = vshrl.u32 2475754826, %v1380
        %v1384 = vor.u32 %v1382, %v1383
        %v1385 = vshll.u32 2475754826, %v1379
        %v1386 = vshrl.u32 2131351028, %v1380
        %v1387 = vor.u32 %v1385, %v1386
        %v1388 = vshll.u32 2131351028, %v1379
        %v1389 = vshrl.u32 2102212464, %v1380
        %v1390 = vor.u32 %v1388, %v1389
        %v1391 = vshll.u32 2102212464, %v1379
        %v1392 = vshrl.u32 920167782, %v1380
        %v1393 = vor.u32 %v1391, %v1392
        %v1394 = vshll.u32 920167782, %v1379
        %v1395 = vshrl.u32 1326507024, %v1380
        %v1396 = vor.u32 %v1394, %v1395
        %vm1397 = vcmp.lt.s32.totalorder %v1378, 1
        %vm1398 = vcmp.lt.s32.totalorder %v1378, 2
        %vm1399 = vcmp.lt.s32.totalorder %v1378, 3
        %vm1400 = vcmp.lt.s32.totalorder %v1378, 4
        %v1401 = vsel %vm1397, %v1381, %v1384
        %v1402 = vsel %vm1400, %v1390, 2102212464
        %v1403 = vsel %vm1399, %v1387, %v1402
        %v1404 = vsel %vm1398, %v1401, %v1403
        %v1405 = vsel %vm1397, %v1384, %v1387
        %v1406 = vsel %vm1400, %v1393, 920167782
        %v1407 = vsel %vm1399, %v1390, %v1406
        %v1408 = vsel %vm1398, %v1405, %v1407
        %v1409 = vsel %vm1397, %v1387, %v1390
        %v1410 = vsel %vm1400, %v1396, 1326507024
        %v1411 = vsel %vm1399, %v1393, %v1410
        %v1412 = vsel %vm1398, %v1409, %v1411
        %v1413 = vshll.u32 %v1373, 8
        %v1414 = vand.u32 %v1413, 65535
        %v1415 = vshrl.u32 %v1413, 16
        %v1416 = vand.u32 %v1412, 65535
        %v1417 = vshrl.u32 %v1412, 16
        %v1418 = vmul.u32 %v1414, %v1416
        %v1419 = vmul.u32 %v1414, %v1417
        %v1420 = vmul.u32 %v1415, %v1416
        %v1421 = vmul.u32 %v1415, %v1417
        %v1422 = vshll.u32 %v1419, 16
        %v1423 = vshrl.u32 %v1419, 16
        %v1424 = vshll.u32 %v1420, 16
        %v1425 = vshrl.u32 %v1420, 16
        %vm1426 = vc.u32 %v1418, %v1422
        %v1427 = vsel %vm1426, 1, 0
        %v1428 = vadd.s32 %v1418, %v1422
        %v1429 = vadd.s32 %v1421, %v1427
        %vm1430 = vc.u32 %v1428, %v1424
        %v1431 = vsel %vm1430, 1, 0
        %v1432 = vadd.s32 %v1428, %v1424
        %v1433 = vadd.s32 %v1429, %v1431
        %v1434 = vadd.s32 %v1433, %v1423
        %v1435 = vadd.s32 %v1434, %v1425
        %v1436 = vand.u32 %v1413, 65535
        %v1437 = vshrl.u32 %v1413, 16
        %v1438 = vand.u32 %v1408, 65535
        %v1439 = vshrl.u32 %v1408, 16
        %v1440 = vmul.u32 %v1436, %v1438
        %v1441 = vmul.u32 %v1436, %v1439
        %v1442 = vmul.u32 %v1437, %v1438
        %v1443 = vmul.u32 %v1437, %v1439
        %v1444 = vshll.u32 %v1441, 16
        %v1445 = vshrl.u32 %v1441, 16
        %v1446 = vshll.u32 %v1442, 16
        %v1447 = vshrl.u32 %v1442, 16
        %vm1448 = vc.u32 %v1440, %v1444
        %v1449 = vsel %vm1448, 1, 0
        %v1450 = vadd.s32 %v1440, %v1444
        %v1451 = vadd.s32 %v1443, %v1449
        %vm1452 = vc.u32 %v1450, %v1446
        %v1453 = vsel %vm1452, 1, 0
        %v1454 = vadd.s32 %v1450, %v1446
        %v1455 = vadd.s32 %v1451, %v1453
        %v1456 = vadd.s32 %v1455, %v1445
        %v1457 = vadd.s32 %v1456, %v1447
        %v1458 = vmul.u32 %v1413, %v1404
        %v1459 = vadd.s32 %v1435, %v1454
        %vm1460 = vc.u32 %v1435, %v1454
        %v1461 = vadd.s32 %v1457, 1
        %v1462 = vsel %vm1460, %v1461, %v1457
        %v1463 = vadd.s32 %v1458, %v1462
        %v1464 = vadd.s32 %v1463, 536870912
        %v1465 = vshrl.u32 %v1464, 30
        %v1466 = vshll.u32 %v1465, 30
        %v1467 = vsub.s32 %v1463, %v1466
        %vm1468 = vcmp.lt.s32.totalorder %v1467, 0
        %v1469 = vsub.s32 0, %v1467
        %v1470 = vsel %vm1468, %v1469, %v1467
        %v1471 = vclz %v1470
        %v1472 = vsub.s32 %v1471, 2
        %vm1473 = vcmp.gt.s32.totalorder 0, %v1472
        %v1474 = vsel %vm1473, 0, %v1472
        %v1475 = vsub.s32 32, %v1474
        %v1476 = vshll.u32 %v1467, %v1474
        %v1477 = vshrl.u32 %v1459, %v1475
        %v1478 = vor.u32 %v1476, %v1477
        %v1479 = vsub.s32 4294967266, %v1474
        %v1480 = vadd.s32 %v1479, 127
        %v1481 = vshll.u32 %v1480, 23
        %v1482 = vor.u32 4788187, %v1481
        %v1483 = vand.u32 2147483647, %v1482
        %v1485 = vcvt.s32.f32 %v1478
        %v1486 = vmul.f32 %v1485, %v1483
        %v1487 = vxor.u32 %v1486, 2147483648
        %v1488 = vsel %vm1367, %v1487, %v1486
        %v1489 = vsub.s32 4, %v1465
        %v1490 = vsel %vm1367, %v1489, %v1465
        %v1491 = vsel %vm1366, %v899, %v1488
        %v1492 = vsel %vm1366, 0, %v1490
        %v1493 = vmul.f32 %v1491, %v1491
        %v1494 = vmul.f32 %v1493, -0.001358992
        %v1495 = vadd.f32 %v1494, 0.041655596
        %v1496 = vmul.f32 %v1493, %v1495
        %v1497 = vadd.f32 %v1496, -0.4999988
        %v1498 = vmul.f32 %v1493, %v1497
        %v1499 = vadd.f32 1.0, %v1498
        %v1500 = vmul.f32 %v1491, %v1491
        %v1501 = vmul.f32 %v1500, -0.00019511016
        %v1502 = vadd.f32 %v1501, 0.008332121
        %v1503 = vmul.f32 %v1500, %v1502
        %v1504 = vadd.f32 %v1503, -0.16666654
        %v1505 = vmul.f32 %v1500, %v1504
        %v1506 = vadd.f32 %v1505, 1.0
        %v1507 = vmul.f32 %v1506, %v1491
        %vm1508 = vweird.f32 %v899
        %v1509 = vadd.s32 %v1492, 3
        %v1510 = vand.u32 %v1509, 3
        %vm1511 = vcmp.lt.s32.totalorder %v1510, 2
        %vm1512 = vcmp.eq.s32.totalorder %v1510, 0
        %v1513 = vxor.u32 %v1507, 2147483648
        %v1514 = vsel %vm1512, %v1499, %v1513
        %vm1515 = vcmp.eq.s32.totalorder %v1510, 2
        %v1516 = vxor.u32 %v1499, 2147483648
        %v1517 = vsel %vm1515, %v1516, %v1507
        %v1518 = vsel %vm1511, %v1514, %v1517
        %v1519 = vsel %vm1508, nan, %v1518
        %1520 = vst [vmem:[%s197 + $0x20] sm:$0xff] %v1054
        %1521 = vst [vmem:[%s197 + $0x28] sm:$0xff] %v1209
        %1522 = vst [vmem:[%s197 + $0x30] sm:$0xff] %v1364
        %1523 = vst [vmem:[%s197 + $0x38] sm:$0xff] %v1519
        %s1524 = sand.u32 %s120, 1
        %s1525 = scalar_lea.sflag [#allocation3], %s1524
        %s1526 = sand.u32 %s120, 1
        %s1527 = smul.addr %s1526, 64
        %s1528 = scalar_lea.vmem [#allocation2], %s1527
        // Predicated region
        $region37: #{tpu_custom_call.1} parent=35 // pred_check
          %p1529 = pneg %p130
        $region38: #{tpu_custom_call.1} parent=35 // pred_check_branch
          %1531 = sbr.rel (%p1529) target = $region40
        $region39: #{tpu_custom_call.1} parent=35 // pred_region
          %1533 = vsyncadd %s1525, 0
          %s1534 = smul.addr %s18, 8
          %s1535 = scalar_lea.hbm %s4, %s1534
          %s1536 = sshll.u32 %s1528, 4
          %s1537 = int_to_ptr.vmem [resolvable:$true] %s1536
          %s1538 = sshll.u32 %s1535, 4
          %s1539 = int_to_ptr.hbm [resolvable:$true] %s1538
          %1544 = dma.vmem_to_hbm [thread:$0]  %s1537, 1024, %s1539, %s1525, 128, 256, 8
        $region40: #{tpu_custom_call.1} parent=35 // pred_fallthru
          _
      $region36: #{tpu_custom_call.1} parent=5 // pred_fallthru
        _
      %p1545 = scmp.le.s32.totalorder 2, %s13
      // Predicated region
      $region41: #{tpu_custom_call.1} parent=5 // pred_check
        %p1546 = pneg %p1545
      $region42: #{tpu_custom_call.1} parent=5 // pred_check_branch
        %1548 = sbr.rel (%p1546) target = $region44
      $region43: #{tpu_custom_call.1} parent=5 // pred_region
        %s1549 = ssub.s32 %s13, 2
        // Predicated region
        $region45: #{tpu_custom_call.1} parent=43 // pred_check
          %p1550 = pneg %p136
        $region46: #{tpu_custom_call.1} parent=43 // pred_check_branch
          %1552 = sbr.rel (%p1550) target = $region48
        $region47: #{tpu_custom_call.1} parent=43 // pred_region
          %s1553 = sand.u32 %s121, 1
          %s1554 = scalar_lea.sflag [#allocation3], %s1553
          %s1555 = sand.u32 %s121, 1
          %s1556 = smul.addr %s1555, 64
          %s1557 = scalar_lea.vmem [#allocation2], %s1556
          %1559 = dma.done %s1554, 1024
        $region48: #{tpu_custom_call.1} parent=43 // pred_fallthru
          _
      $region44: #{tpu_custom_call.1} parent=5 // pred_fallthru
        _
    $region6: #{tpu_custom_call.1} parent=1 // loop_footer
      %s17 = sadd.s32 1, %s13
    $region7: #{tpu_custom_call.1} parent=1 // loop_footer_branch
      %12 = sbr.rel target = $region3
    $region8: #{tpu_custom_call.1} parent=1 // loop_exit
      _
    %1560 = vsyncpa [#allocation3], 1
    %s1561 = scalar_lea.sflag [#allocation3], 1
    %1562 = vsyncpa %s1561, 1

</llo_original>
